<compile_context>
chip_gen: v5e
topology: v5e:2x2
jax: 0.10.0
libtpu: 0.0.40
codegen_flags: <defaults>
</compile_context>

<pallas_src>
import numpy as np
import jax
import jax.numpy as jnp
from jax import lax
from jax.experimental import pallas as pl
from jax.experimental.pallas import tpu as pltpu


# ----------------------------- Pallas kernel --------------------------------

def net_kernel(x_ref,                        # (B, 28, 28) bf16 image block
               B1_ref, b1_ref,               # conv1 packed weights / bias row
               B2_ref, b2_ref,               # conv2 packed weights / bias row
               WL_ref, bl_ref,               # linear packed weights / bias row
               out_ref,                      # (B, 128) f32 logits (10 used)
               s1_ref, h1_ref, s2_ref, h2_ref):   # VMEM scratch
    f32 = jnp.float32
    B = x_ref.shape[0]

    def dot(a, b):
        # Default precision (single MXU pass, bf16 operands internally).
        return jnp.dot(a, b, preferred_element_type=f32)

    def pool_cols(acc):
        # Max over adjacent lane pairs via an XLU lane rotate.  shift=127 on a
        # 128-lane axis == shift -1, i.e. lane k sees lane k+1, so lane k holds
        # max(acc[k], acc[k+1]).  Pooled values live at even lanes; odd lanes
        # are garbage and the packed downstream weights have zero rows there.
        rolled = pltpu.roll(acc, shift=acc.shape[-1] - 1, axis=acc.ndim - 1)
        return jnp.maximum(acc, rolled)

    # ---- conv1 (1 -> 5 ch, 5x5 valid): five (B*24, 28) @ (28, 128) taps ----
    acc1 = jnp.broadcast_to(b1_ref[...], (B * 24, 128))          # bias init
    for kh in range(5):
        xw = x_ref[:, pl.ds(kh, 24), :].reshape(B * 24, 28)      # ref window
        acc1 = acc1 + dot(xw, B1_ref[kh])

    # ---- pool1: columns via roll+max, rows via strided sublane reads -------
    s1_ref[...] = pool_cols(acc1).reshape(B, 24, 128)
    h1 = jnp.maximum(s1_ref[:, pl.ds(0, 12, stride=2), :],
                     s1_ref[:, pl.ds(1, 12, stride=2), :])
    h1_ref[...] = jnp.maximum(h1, 0.0)                           # (B, 12, 128)

    # ---- conv2 (5 -> 10 ch, 5x5 valid): five (B*8, 128) @ (128, 128) taps --
    acc2 = jnp.broadcast_to(b2_ref[...], (B * 8, 128))           # bias init
    for kh in range(5):
        hw = h1_ref[:, pl.ds(kh, 8), :].reshape(B * 8, 128)
        acc2 = acc2 + dot(hw, B2_ref[kh])

    # ---- pool2: columns via roll+max, rows via global stride-2 reads -------
    # (8 rows per image is even, so the global stride-2 pairing never crosses
    #  image boundaries.)
    s2_ref[...] = pool_cols(acc2)                                # (B*8, 128)
    h2 = jnp.maximum(s2_ref[pl.ds(0, B * 4, stride=2), :],
                     s2_ref[pl.ds(1, B * 4, stride=2), :])
    h2_ref[...] = jnp.maximum(h2, 0.0)                           # rows b*4 + i

    # ---- flatten + linear (160 -> 10 in 128 padded lanes) ------------------
    out = jnp.broadcast_to(bl_ref[...], (B, 128))                # bias init
    for i in range(4):                       # one (B,128)@(128,128) per row i
        gi = h2_ref[pl.ds(i, B, stride=4), :]    # pooled row i of every image
        out = out + dot(gi, WL_ref[i])
    out_ref[...] = out


# ------------------------------- wrapper -------------------------------------

def _round_up(x, m):
    return (x + m - 1) // m * m


def _rep_spec(shape):
    zeros = (0,) * len(shape)
    return pl.BlockSpec(shape, lambda i, _z=zeros: _z)


def net_forward(x_nchw, packed_params, *, max_block=128):
    """x_nchw: (N, 1, 28, 28) float -> (N, 10) float32 logits."""
    n = x_nchw.shape[0]
    # bf16 input: halves the dominant per-step HBM stream; the MXU runs at
    # default (bf16) precision anyway, so numerics are essentially unchanged.
    x2d = x_nchw[:, 0, :, :].astype(jnp.bfloat16)                # (N, 28, 28)

    # Batch block: multiple of 8 sublanes, capped at 128 so the per-step
    # working set stays well inside v5e's 16 MiB scoped default and v7x's
    # 32 MiB scoped / 64 MiB physical VMEM.  Size it so the grid has at least
    # 2 steps: with dimension_semantics=("parallel",) both v7x TensorCores
    # then get work even for small/medium batches.
    block_b = max(8, min(max_block, _round_up(pl.cdiv(n, 2), 8)))
    grid_n = max(2, pl.cdiv(n, block_b))
    n_pad = grid_n * block_b
    if n_pad != n:
        x2d = jnp.pad(x2d, ((0, n_pad - n), (0, 0), (0, 0)))

    in_specs = [pl.BlockSpec((block_b, 28, 28), lambda i: (i, 0, 0))]
    in_specs += [_rep_spec(p.shape) for p in packed_params]
    out_specs = pl.BlockSpec((block_b, 128), lambda i: (i, 0))   # lane-dense

    out = pl.pallas_call(
        net_kernel,
        out_shape=jax.ShapeDtypeStruct((n_pad, 128), jnp.float32),
        grid_spec=pltpu.PrefetchScalarGridSpec(
            num_scalar_prefetch=0,
            grid=(grid_n,),
            in_specs=in_specs,
            out_specs=out_specs,
            scratch_shapes=[
                pltpu.VMEM((block_b, 24, 128), jnp.float32),     # s1 (pre row-pool)
                pltpu.VMEM((block_b, 12, 128), jnp.float32),     # h1
                pltpu.VMEM((block_b * 8, 128), jnp.float32),     # s2 (pre row-pool)
                pltpu.VMEM((block_b * 4, 128), jnp.float32),     # h2
            ],
        ),
        compiler_params=pltpu.CompilerParams(
            dimension_semantics=("parallel",),
            # Headroom above v5e's 16 MiB scoped default; equals the default
            # on v6e/v7x and stays well below v7x's 64 MiB physical VMEM.
            vmem_limit_bytes=32 * 1024 * 1024,
        ),
    )(x2d, *packed_params)
    return out[:n, :10]


# ------------------------- parameter construction ---------------------------

def init_params(key):
    """Deterministic init matching the PyTorch layer shapes."""
    k1, k2, k3, k4, k5, k6 = jax.random.split(key, 6)

    def u(k, shape, fan_in):
        b = 1.0 / np.sqrt(fan_in)
        return jax.random.uniform(k, shape, jnp.float32, -b, b)

    w1 = u(k1, (5, 1, 5, 5), 1 * 5 * 5)
    b1 = u(k2, (5,), 1 * 5 * 5)
    w2 = u(k3, (10, 5, 5, 5), 5 * 5 * 5)
    b2 = u(k4, (10,), 5 * 5 * 5)
    wl = u(k5, (10, 160), 160)
    bl = u(k6, (10,), 160)
    return w1, b1, w2, b2, wl, bl


def pack_params(w1, b1, w2, b2, wl, bl):
    """Rearrange weights into 128-lane-padded, matmul-friendly matrices."""
    w1 = np.asarray(w1, np.float32); b1 = np.asarray(b1, np.float32)
    w2 = np.asarray(w2, np.float32); b2 = np.asarray(b2, np.float32)
    wl = np.asarray(wl, np.float32); bl = np.asarray(bl, np.float32)

    # conv1 Toeplitz blocks: acc1[(b,i), c*24+j] = sum_kh (x[b,i+kh,:] @ B1[kh])
    B1 = np.zeros((5, 28, 128), np.float32)
    for kh in range(5):
        for c in range(5):
            for j in range(24):
                for kw in range(5):
                    B1[kh, j + kw, c * 24 + j] = w1[c, 0, kh, kw]
    b1r = np.zeros((1, 128), np.float32)
    for c in range(5):
        b1r[0, c * 24:(c + 1) * 24] = b1[c]

    # conv2 Toeplitz blocks reading h1's *even-lane* pooled layout:
    #   h1[(b,i), c1*24 + 2*jj] = pool1/relu value at (c1, i, jj)
    #   acc2[(b,i), c2*8 + j]   = sum_kh (h1[b,i+kh,:] @ B2[kh])
    # Odd / unused h1 lanes carry garbage; the matching B2 rows stay zero.
    B2 = np.zeros((5, 128, 128), np.float32)
    for kh in range(5):
        for c2 in range(10):
            for c1 in range(5):
                for j in range(8):
                    for kw in range(5):
                        B2[kh, c1 * 24 + 2 * (j + kw), c2 * 8 + j] = \
                            w2[c2, c1, kh, kw]
    b2r = np.zeros((1, 128), np.float32)
    for c2 in range(10):
        b2r[0, c2 * 8:(c2 + 1) * 8] = b2[c2]

    # linear weights, one (128,128) block per pooled row i, reading h2's
    # even-lane layout h2[b*4+i, c2*8 + 2*j] and matching torch.flatten's
    # (c2, i, j) ordering.  Garbage h2 lanes hit all-zero rows.
    WL = np.zeros((4, 128, 128), np.float32)
    for i in range(4):
        for c2 in range(10):
            for j in range(4):
                WL[i, c2 * 8 + 2 * j, :10] = wl[:, c2 * 16 + i * 4 + j]
    blr = np.zeros((1, 128), np.float32)
    blr[0, :10] = bl

    # conv1 weights bf16 to match the bf16 image block; everything else f32.
    return (jnp.asarray(B1, jnp.bfloat16), jnp.asarray(b1r),
            jnp.asarray(B2), jnp.asarray(b2r),
            jnp.asarray(WL), jnp.asarray(blr))


# ------------------------- pure-JAX reference (check) -----------------------

def reference_forward(x, w1, b1, w2, b2, wl, bl):
    dn = ("NCHW", "OIHW", "NCHW")
    y = lax.conv_general_dilated(x, w1, (1, 1), "VALID", dimension_numbers=dn)
    y = y + b1[None, :, None, None]
    y = lax.reduce_window(y, -jnp.inf, lax.max, (1, 1, 2, 2), (1, 1, 2, 2), "VALID")
    y = jnp.maximum(y, 0.0)
    y = lax.conv_general_dilated(y, w2, (1, 1), "VALID", dimension_numbers=dn)
    y = y + b2[None, :, None, None]
    y = lax.reduce_window(y, -jnp.inf, lax.max, (1, 1, 2, 2), (1, 1, 2, 2), "VALID")
    y = jnp.maximum(y, 0.0)
    y = y.reshape(y.shape[0], -1)                    # torch.flatten(start_dim=1)
    return y @ wl.T + bl


# ---------------------------------- main -------------------------------------

if __name__ == "__main__":
    key = jax.random.PRNGKey(0)
    kx, kp = jax.random.split(key)

    # Input consistent with the module: 28x28 single-channel images, batch=2.
    x = jax.random.normal(kx, (2, 1, 28, 28), jnp.float32)

    w1, b1, w2, b2, wl, bl = init_params(kp)
    packed = pack_params(w1, b1, w2, b2, wl, bl)

    out = net_forward(x, packed)
    out = jax.block_until_ready(out)

    ref = reference_forward(x, w1, b1, w2, b2, wl, bl)
    assert out.shape == (2, 10), out.shape
    if not np.allclose(np.asarray(out), np.asarray(ref), rtol=2e-2, atol=2e-2):
        raise AssertionError(
            "Pallas kernel output mismatch; max abs diff = "
            f"{np.max(np.abs(np.asarray(out) - np.asarray(ref)))}")

    print("KERNEL_OK")
</pallas_src>

<mosaic_0001>
module attributes {stable_mosaic.version = 11 : i64} {
  func.func @net_kernel(%arg0: i32, %arg1: memref<8x28x28xbf16, #tpu.memory_space<vmem>>, %arg2: memref<5x28x128xbf16, #tpu.memory_space<vmem>>, %arg3: memref<1x128xf32, #tpu.memory_space<vmem>>, %arg4: memref<5x128x128xf32, #tpu.memory_space<vmem>>, %arg5: memref<1x128xf32, #tpu.memory_space<vmem>>, %arg6: memref<4x128x128xf32, #tpu.memory_space<vmem>>, %arg7: memref<1x128xf32, #tpu.memory_space<vmem>>, %arg8: memref<8x128xf32, #tpu.memory_space<vmem>>, %arg9: memref<8x24x128xf32, #tpu.memory_space<vmem>>, %arg10: memref<8x12x128xf32, #tpu.memory_space<vmem>>, %arg11: memref<64x128xf32, #tpu.memory_space<vmem>>, %arg12: memref<32x128xf32, #tpu.memory_space<vmem>>) attributes {dimension_semantics = [#tpu.dimension_semantics<parallel>], iteration_bounds = array<i64: 2>, scalar_prefetch = 0 : i64, scratch_operands = 4 : i64, tpu.core_type = #tpu.core_type<tc>, window_params = [{transform_indices = @transform_0, window_bounds = array<i64: 8, 28, 28>}, {pipeline_mode = #tpu.pipeline_mode<synchronous>, transform_indices = @transform_1, window_bounds = array<i64: 5, 28, 128>}, {pipeline_mode = #tpu.pipeline_mode<synchronous>, transform_indices = @transform_2, window_bounds = array<i64: 1, 128>}, {pipeline_mode = #tpu.pipeline_mode<synchronous>, transform_indices = @transform_3, window_bounds = array<i64: 5, 128, 128>}, {pipeline_mode = #tpu.pipeline_mode<synchronous>, transform_indices = @transform_4, window_bounds = array<i64: 1, 128>}, {pipeline_mode = #tpu.pipeline_mode<synchronous>, transform_indices = @transform_5, window_bounds = array<i64: 4, 128, 128>}, {pipeline_mode = #tpu.pipeline_mode<synchronous>, transform_indices = @transform_6, window_bounds = array<i64: 1, 128>}, {transform_indices = @transform_7, window_bounds = array<i64: 8, 128>}]} {
    %c0 = arith.constant 0 : index
    %c0_0 = arith.constant 0 : index
    %0 = vector.load %arg3[%c0, %c0_0] : memref<1x128xf32, #tpu.memory_space<vmem>>, vector<1x128xf32>
    %1 = vector.shape_cast %0 : vector<1x128xf32> to vector<1x128xf32>
    %2 = vector.broadcast %1 : vector<1x128xf32> to vector<192x128xf32>
    %c0_1 = arith.constant 0 : index
    %c0_2 = arith.constant 0 : index
    %c0_3 = arith.constant 0 : index
    %3 = vector.load %arg1[%c0_1, %c0_2, %c0_3] : memref<8x28x28xbf16, #tpu.memory_space<vmem>>, vector<8x24x28xbf16>
    %4 = vector.shape_cast %3 : vector<8x24x28xbf16> to vector<192x28xbf16>
    %c0_4 = arith.constant 0 : index
    %c0_5 = arith.constant 0 : index
    %c0_6 = arith.constant 0 : index
    %5 = vector.load %arg2[%c0_4, %c0_5, %c0_6] : memref<5x28x128xbf16, #tpu.memory_space<vmem>>, vector<1x28x128xbf16>
    %6 = vector.shape_cast %5 : vector<1x28x128xbf16> to vector<28x128xbf16>
    %cst = arith.constant dense<0.000000e+00> : vector<192x128xf32>
    %7 = tpu.matmul %4, %6, %cst {dimension_numbers = #tpu.dot_dimension_numbers<[1], [0], [0], [1], [0, 0, 1, 1], [], []>} : vector<192x28xbf16>, vector<28x128xbf16>, vector<192x128xf32> -> vector<192x128xf32>
    %8 = arith.addf %2, %7 : vector<192x128xf32>
    %c0_7 = arith.constant 0 : index
    %c1 = arith.constant 1 : index
    %c0_8 = arith.constant 0 : index
    %9 = vector.load %arg1[%c0_7, %c1, %c0_8] : memref<8x28x28xbf16, #tpu.memory_space<vmem>>, vector<8x24x28xbf16>
    %10 = vector.shape_cast %9 : vector<8x24x28xbf16> to vector<192x28xbf16>
    %c1_9 = arith.constant 1 : index
    %c0_10 = arith.constant 0 : index
    %c0_11 = arith.constant 0 : index
    %11 = vector.load %arg2[%c1_9, %c0_10, %c0_11] : memref<5x28x128xbf16, #tpu.memory_space<vmem>>, vector<1x28x128xbf16>
    %12 = vector.shape_cast %11 : vector<1x28x128xbf16> to vector<28x128xbf16>
    %cst_12 = arith.constant dense<0.000000e+00> : vector<192x128xf32>
    %13 = tpu.matmul %10, %12, %cst_12 {dimension_numbers = #tpu.dot_dimension_numbers<[1], [0], [0], [1], [0, 0, 1, 1], [], []>} : vector<192x28xbf16>, vector<28x128xbf16>, vector<192x128xf32> -> vector<192x128xf32>
    %14 = arith.addf %8, %13 : vector<192x128xf32>
    %c0_13 = arith.constant 0 : index
    %c2 = arith.constant 2 : index
    %c0_14 = arith.constant 0 : index
    %15 = vector.load %arg1[%c0_13, %c2, %c0_14] : memref<8x28x28xbf16, #tpu.memory_space<vmem>>, vector<8x24x28xbf16>
    %16 = vector.shape_cast %15 : vector<8x24x28xbf16> to vector<192x28xbf16>
    %c2_15 = arith.constant 2 : index
    %c0_16 = arith.constant 0 : index
    %c0_17 = arith.constant 0 : index
    %17 = vector.load %arg2[%c2_15, %c0_16, %c0_17] : memref<5x28x128xbf16, #tpu.memory_space<vmem>>, vector<1x28x128xbf16>
    %18 = vector.shape_cast %17 : vector<1x28x128xbf16> to vector<28x128xbf16>
    %cst_18 = arith.constant dense<0.000000e+00> : vector<192x128xf32>
    %19 = tpu.matmul %16, %18, %cst_18 {dimension_numbers = #tpu.dot_dimension_numbers<[1], [0], [0], [1], [0, 0, 1, 1], [], []>} : vector<192x28xbf16>, vector<28x128xbf16>, vector<192x128xf32> -> vector<192x128xf32>
    %20 = arith.addf %14, %19 : vector<192x128xf32>
    %c0_19 = arith.constant 0 : index
    %c3 = arith.constant 3 : index
    %c0_20 = arith.constant 0 : index
    %21 = vector.load %arg1[%c0_19, %c3, %c0_20] : memref<8x28x28xbf16, #tpu.memory_space<vmem>>, vector<8x24x28xbf16>
    %22 = vector.shape_cast %21 : vector<8x24x28xbf16> to vector<192x28xbf16>
    %c3_21 = arith.constant 3 : index
    %c0_22 = arith.constant 0 : index
    %c0_23 = arith.constant 0 : index
    %23 = vector.load %arg2[%c3_21, %c0_22, %c0_23] : memref<5x28x128xbf16, #tpu.memory_space<vmem>>, vector<1x28x128xbf16>
    %24 = vector.shape_cast %23 : vector<1x28x128xbf16> to vector<28x128xbf16>
    %cst_24 = arith.constant dense<0.000000e+00> : vector<192x128xf32>
    %25 = tpu.matmul %22, %24, %cst_24 {dimension_numbers = #tpu.dot_dimension_numbers<[1], [0], [0], [1], [0, 0, 1, 1], [], []>} : vector<192x28xbf16>, vector<28x128xbf16>, vector<192x128xf32> -> vector<192x128xf32>
    %26 = arith.addf %20, %25 : vector<192x128xf32>
    %c0_25 = arith.constant 0 : index
    %c4 = arith.constant 4 : index
    %c0_26 = arith.constant 0 : index
    %27 = vector.load %arg1[%c0_25, %c4, %c0_26] : memref<8x28x28xbf16, #tpu.memory_space<vmem>>, vector<8x24x28xbf16>
    %28 = vector.shape_cast %27 : vector<8x24x28xbf16> to vector<192x28xbf16>
    %c4_27 = arith.constant 4 : index
    %c0_28 = arith.constant 0 : index
    %c0_29 = arith.constant 0 : index
    %29 = vector.load %arg2[%c4_27, %c0_28, %c0_29] : memref<5x28x128xbf16, #tpu.memory_space<vmem>>, vector<1x28x128xbf16>
    %30 = vector.shape_cast %29 : vector<1x28x128xbf16> to vector<28x128xbf16>
    %cst_30 = arith.constant dense<0.000000e+00> : vector<192x128xf32>
    %31 = tpu.matmul %28, %30, %cst_30 {dimension_numbers = #tpu.dot_dimension_numbers<[1], [0], [0], [1], [0, 0, 1, 1], [], []>} : vector<192x28xbf16>, vector<28x128xbf16>, vector<192x128xf32> -> vector<192x128xf32>
    %32 = arith.addf %26, %31 : vector<192x128xf32>
    %c127_i32 = arith.constant 127 : i32
    %33 = tpu.dynamic_rotate %32 by %c127_i32 dim 1 : vector<192x128xf32>, i32 -> vector<192x128xf32>
    %34 = arith.maximumf %32, %33 : vector<192x128xf32>
    %35 = vector.shape_cast %34 : vector<192x128xf32> to vector<8x24x128xf32>
    %c0_31 = arith.constant 0 : index
    %c0_32 = arith.constant 0 : index
    %c0_33 = arith.constant 0 : index
    %36 = vector.load %arg9[%c0_31, %c0_32, %c0_33] : memref<8x24x128xf32, #tpu.memory_space<vmem>>, vector<8x24x128xf32>
    tpu.vector_store %arg9[%c0_31, %c0_32, %c0_33], %35 {strides = array<i32>} : memref<8x24x128xf32, #tpu.memory_space<vmem>>, vector<8x24x128xf32>,
    %c0_34 = arith.constant 0 : index
    %c0_35 = arith.constant 0 : index
    %c0_36 = arith.constant 0 : index
    %37 = tpu.strided_load %arg9[%c0_34, %c0_35, %c0_36] {strides = array<i32: 1, 2, 1>} : memref<8x24x128xf32, #tpu.memory_space<vmem>>, vector<8x12x128xf32>
    %c0_37 = arith.constant 0 : index
    %c1_38 = arith.constant 1 : index
    %c0_39 = arith.constant 0 : index
    %38 = tpu.strided_load %arg9[%c0_37, %c1_38, %c0_39] {strides = array<i32: 1, 2, 1>} : memref<8x24x128xf32, #tpu.memory_space<vmem>>, vector<8x12x128xf32>
    %39 = arith.maximumf %37, %38 : vector<8x12x128xf32>
    %cst_40 = arith.constant 0.000000e+00 : f32
    %40 = vector.broadcast %cst_40 : f32 to vector<8x12x128xf32>
    %41 = arith.maximumf %39, %40 : vector<8x12x128xf32>
    %c0_41 = arith.constant 0 : index
    %c0_42 = arith.constant 0 : index
    %c0_43 = arith.constant 0 : index
    %42 = vector.load %arg10[%c0_41, %c0_42, %c0_43] : memref<8x12x128xf32, #tpu.memory_space<vmem>>, vector<8x12x128xf32>
    tpu.vector_store %arg10[%c0_41, %c0_42, %c0_43], %41 {strides = array<i32>} : memref<8x12x128xf32, #tpu.memory_space<vmem>>, vector<8x12x128xf32>,
    %c0_44 = arith.constant 0 : index
    %c0_45 = arith.constant 0 : index
    %43 = vector.load %arg5[%c0_44, %c0_45] : memref<1x128xf32, #tpu.memory_space<vmem>>, vector<1x128xf32>
    %44 = vector.shape_cast %43 : vector<1x128xf32> to vector<1x128xf32>
    %45 = vector.broadcast %44 : vector<1x128xf32> to vector<64x128xf32>
    %c0_46 = arith.constant 0 : index
    %c0_47 = arith.constant 0 : index
    %c0_48 = arith.constant 0 : index
    %46 = vector.load %arg10[%c0_46, %c0_47, %c0_48] : memref<8x12x128xf32, #tpu.memory_space<vmem>>, vector<8x8x128xf32>
    %47 = vector.shape_cast %46 : vector<8x8x128xf32> to vector<64x128xf32>
    %c0_49 = arith.constant 0 : index
    %c0_50 = arith.constant 0 : index
    %c0_51 = arith.constant 0 : index
    %48 = vector.load %arg4[%c0_49, %c0_50, %c0_51] : memref<5x128x128xf32, #tpu.memory_space<vmem>>, vector<1x128x128xf32>
    %49 = vector.shape_cast %48 : vector<1x128x128xf32> to vector<128x128xf32>
    %cst_52 = arith.constant dense<0.000000e+00> : vector<64x128xf32>
    %50 = tpu.matmul %47, %49, %cst_52 {dimension_numbers = #tpu.dot_dimension_numbers<[1], [0], [0], [1], [0, 0, 1, 1], [], []>} : vector<64x128xf32>, vector<128x128xf32>, vector<64x128xf32> -> vector<64x128xf32>
    %51 = arith.addf %45, %50 : vector<64x128xf32>
    %c0_53 = arith.constant 0 : index
    %c1_54 = arith.constant 1 : index
    %c0_55 = arith.constant 0 : index
    %52 = vector.load %arg10[%c0_53, %c1_54, %c0_55] : memref<8x12x128xf32, #tpu.memory_space<vmem>>, vector<8x8x128xf32>
    %53 = vector.shape_cast %52 : vector<8x8x128xf32> to vector<64x128xf32>
    %c1_56 = arith.constant 1 : index
    %c0_57 = arith.constant 0 : index
    %c0_58 = arith.constant 0 : index
    %54 = vector.load %arg4[%c1_56, %c0_57, %c0_58] : memref<5x128x128xf32, #tpu.memory_space<vmem>>, vector<1x128x128xf32>
    %55 = vector.shape_cast %54 : vector<1x128x128xf32> to vector<128x128xf32>
    %cst_59 = arith.constant dense<0.000000e+00> : vector<64x128xf32>
    %56 = tpu.matmul %53, %55, %cst_59 {dimension_numbers = #tpu.dot_dimension_numbers<[1], [0], [0], [1], [0, 0, 1, 1], [], []>} : vector<64x128xf32>, vector<128x128xf32>, vector<64x128xf32> -> vector<64x128xf32>
    %57 = arith.addf %51, %56 : vector<64x128xf32>
    %c0_60 = arith.constant 0 : index
    %c2_61 = arith.constant 2 : index
    %c0_62 = arith.constant 0 : index
    %58 = vector.load %arg10[%c0_60, %c2_61, %c0_62] : memref<8x12x128xf32, #tpu.memory_space<vmem>>, vector<8x8x128xf32>
    %59 = vector.shape_cast %58 : vector<8x8x128xf32> to vector<64x128xf32>
    %c2_63 = arith.constant 2 : index
    %c0_64 = arith.constant 0 : index
    %c0_65 = arith.constant 0 : index
    %60 = vector.load %arg4[%c2_63, %c0_64, %c0_65] : memref<5x128x128xf32, #tpu.memory_space<vmem>>, vector<1x128x128xf32>
    %61 = vector.shape_cast %60 : vector<1x128x128xf32> to vector<128x128xf32>
    %cst_66 = arith.constant dense<0.000000e+00> : vector<64x128xf32>
    %62 = tpu.matmul %59, %61, %cst_66 {dimension_numbers = #tpu.dot_dimension_numbers<[1], [0], [0], [1], [0, 0, 1, 1], [], []>} : vector<64x128xf32>, vector<128x128xf32>, vector<64x128xf32> -> vector<64x128xf32>
    %63 = arith.addf %57, %62 : vector<64x128xf32>
    %c0_67 = arith.constant 0 : index
    %c3_68 = arith.constant 3 : index
    %c0_69 = arith.constant 0 : index
    %64 = vector.load %arg10[%c0_67, %c3_68, %c0_69] : memref<8x12x128xf32, #tpu.memory_space<vmem>>, vector<8x8x128xf32>
    %65 = vector.shape_cast %64 : vector<8x8x128xf32> to vector<64x128xf32>
    %c3_70 = arith.constant 3 : index
    %c0_71 = arith.constant 0 : index
    %c0_72 = arith.constant 0 : index
    %66 = vector.load %arg4[%c3_70, %c0_71, %c0_72] : memref<5x128x128xf32, #tpu.memory_space<vmem>>, vector<1x128x128xf32>
    %67 = vector.shape_cast %66 : vector<1x128x128xf32> to vector<128x128xf32>
    %cst_73 = arith.constant dense<0.000000e+00> : vector<64x128xf32>
    %68 = tpu.matmul %65, %67, %cst_73 {dimension_numbers = #tpu.dot_dimension_numbers<[1], [0], [0], [1], [0, 0, 1, 1], [], []>} : vector<64x128xf32>, vector<128x128xf32>, vector<64x128xf32> -> vector<64x128xf32>
    %69 = arith.addf %63, %68 : vector<64x128xf32>
    %c0_74 = arith.constant 0 : index
    %c4_75 = arith.constant 4 : index
    %c0_76 = arith.constant 0 : index
    %70 = vector.load %arg10[%c0_74, %c4_75, %c0_76] : memref<8x12x128xf32, #tpu.memory_space<vmem>>, vector<8x8x128xf32>
    %71 = vector.shape_cast %70 : vector<8x8x128xf32> to vector<64x128xf32>
    %c4_77 = arith.constant 4 : index
    %c0_78 = arith.constant 0 : index
    %c0_79 = arith.constant 0 : index
    %72 = vector.load %arg4[%c4_77, %c0_78, %c0_79] : memref<5x128x128xf32, #tpu.memory_space<vmem>>, vector<1x128x128xf32>
    %73 = vector.shape_cast %72 : vector<1x128x128xf32> to vector<128x128xf32>
    %cst_80 = arith.constant dense<0.000000e+00> : vector<64x128xf32>
    %74 = tpu.matmul %71, %73, %cst_80 {dimension_numbers = #tpu.dot_dimension_numbers<[1], [0], [0], [1], [0, 0, 1, 1], [], []>} : vector<64x128xf32>, vector<128x128xf32>, vector<64x128xf32> -> vector<64x128xf32>
    %75 = arith.addf %69, %74 : vector<64x128xf32>
    %c127_i32_81 = arith.constant 127 : i32
    %76 = tpu.dynamic_rotate %75 by %c127_i32_81 dim 1 : vector<64x128xf32>, i32 -> vector<64x128xf32>
    %77 = arith.maximumf %75, %76 : vector<64x128xf32>
    %c0_82 = arith.constant 0 : index
    %c0_83 = arith.constant 0 : index
    %78 = vector.load %arg11[%c0_82, %c0_83] : memref<64x128xf32, #tpu.memory_space<vmem>>, vector<64x128xf32>
    tpu.vector_store %arg11[%c0_82, %c0_83], %77 {strides = array<i32>} : memref<64x128xf32, #tpu.memory_space<vmem>>, vector<64x128xf32>,
    %c0_84 = arith.constant 0 : index
    %c0_85 = arith.constant 0 : index
    %79 = tpu.strided_load %arg11[%c0_84, %c0_85] {strides = array<i32: 2, 1>} : memref<64x128xf32, #tpu.memory_space<vmem>>, vector<32x128xf32>
    %c1_86 = arith.constant 1 : index
    %c0_87 = arith.constant 0 : index
    %80 = tpu.strided_load %arg11[%c1_86, %c0_87] {strides = array<i32: 2, 1>} : memref<64x128xf32, #tpu.memory_space<vmem>>, vector<32x128xf32>
    %81 = arith.maximumf %79, %80 : vector<32x128xf32>
    %cst_88 = arith.constant 0.000000e+00 : f32
    %82 = vector.broadcast %cst_88 : f32 to vector<32x128xf32>
    %83 = arith.maximumf %81, %82 : vector<32x128xf32>
    %c0_89 = arith.constant 0 : index
    %c0_90 = arith.constant 0 : index
    %84 = vector.load %arg12[%c0_89, %c0_90] : memref<32x128xf32, #tpu.memory_space<vmem>>, vector<32x128xf32>
    tpu.vector_store %arg12[%c0_89, %c0_90], %83 {strides = array<i32>} : memref<32x128xf32, #tpu.memory_space<vmem>>, vector<32x128xf32>,
    %c0_91 = arith.constant 0 : index
    %c0_92 = arith.constant 0 : index
    %85 = vector.load %arg7[%c0_91, %c0_92] : memref<1x128xf32, #tpu.memory_space<vmem>>, vector<1x128xf32>
    %86 = vector.shape_cast %85 : vector<1x128xf32> to vector<1x128xf32>
    %87 = vector.broadcast %86 : vector<1x128xf32> to vector<8x128xf32>
    %c0_93 = arith.constant 0 : index
    %c0_94 = arith.constant 0 : index
    %88 = tpu.strided_load %arg12[%c0_93, %c0_94] {strides = array<i32: 4, 1>} : memref<32x128xf32, #tpu.memory_space<vmem>>, vector<8x128xf32>
    %c0_95 = arith.constant 0 : index
    %c0_96 = arith.constant 0 : index
    %c0_97 = arith.constant 0 : index
    %89 = vector.load %arg6[%c0_95, %c0_96, %c0_97] : memref<4x128x128xf32, #tpu.memory_space<vmem>>, vector<1x128x128xf32>
    %90 = vector.shape_cast %89 : vector<1x128x128xf32> to vector<128x128xf32>
    %cst_98 = arith.constant dense<0.000000e+00> : vector<8x128xf32>
    %91 = tpu.matmul %88, %90, %cst_98 {dimension_numbers = #tpu.dot_dimension_numbers<[1], [0], [0], [1], [0, 0, 1, 1], [], []>} : vector<8x128xf32>, vector<128x128xf32>, vector<8x128xf32> -> vector<8x128xf32>
    %92 = arith.addf %87, %91 : vector<8x128xf32>
    %c1_99 = arith.constant 1 : index
    %c0_100 = arith.constant 0 : index
    %93 = tpu.strided_load %arg12[%c1_99, %c0_100] {strides = array<i32: 4, 1>} : memref<32x128xf32, #tpu.memory_space<vmem>>, vector<8x128xf32>
    %c1_101 = arith.constant 1 : index
    %c0_102 = arith.constant 0 : index
    %c0_103 = arith.constant 0 : index
    %94 = vector.load %arg6[%c1_101, %c0_102, %c0_103] : memref<4x128x128xf32, #tpu.memory_space<vmem>>, vector<1x128x128xf32>
    %95 = vector.shape_cast %94 : vector<1x128x128xf32> to vector<128x128xf32>
    %cst_104 = arith.constant dense<0.000000e+00> : vector<8x128xf32>
    %96 = tpu.matmul %93, %95, %cst_104 {dimension_numbers = #tpu.dot_dimension_numbers<[1], [0], [0], [1], [0, 0, 1, 1], [], []>} : vector<8x128xf32>, vector<128x128xf32>, vector<8x128xf32> -> vector<8x128xf32>
    %97 = arith.addf %92, %96 : vector<8x128xf32>
    %c2_105 = arith.constant 2 : index
    %c0_106 = arith.constant 0 : index
    %98 = tpu.strided_load %arg12[%c2_105, %c0_106] {strides = array<i32: 4, 1>} : memref<32x128xf32, #tpu.memory_space<vmem>>, vector<8x128xf32>
    %c2_107 = arith.constant 2 : index
    %c0_108 = arith.constant 0 : index
    %c0_109 = arith.constant 0 : index
    %99 = vector.load %arg6[%c2_107, %c0_108, %c0_109] : memref<4x128x128xf32, #tpu.memory_space<vmem>>, vector<1x128x128xf32>
    %100 = vector.shape_cast %99 : vector<1x128x128xf32> to vector<128x128xf32>
    %cst_110 = arith.constant dense<0.000000e+00> : vector<8x128xf32>
    %101 = tpu.matmul %98, %100, %cst_110 {dimension_numbers = #tpu.dot_dimension_numbers<[1], [0], [0], [1], [0, 0, 1, 1], [], []>} : vector<8x128xf32>, vector<128x128xf32>, vector<8x128xf32> -> vector<8x128xf32>
    %102 = arith.addf %97, %101 : vector<8x128xf32>
    %c3_111 = arith.constant 3 : index
    %c0_112 = arith.constant 0 : index
    %103 = tpu.strided_load %arg12[%c3_111, %c0_112] {strides = array<i32: 4, 1>} : memref<32x128xf32, #tpu.memory_space<vmem>>, vector<8x128xf32>
    %c3_113 = arith.constant 3 : index
    %c0_114 = arith.constant 0 : index
    %c0_115 = arith.constant 0 : index
    %104 = vector.load %arg6[%c3_113, %c0_114, %c0_115] : memref<4x128x128xf32, #tpu.memory_space<vmem>>, vector<1x128x128xf32>
    %105 = vector.shape_cast %104 : vector<1x128x128xf32> to vector<128x128xf32>
    %cst_116 = arith.constant dense<0.000000e+00> : vector<8x128xf32>
    %106 = tpu.matmul %103, %105, %cst_116 {dimension_numbers = #tpu.dot_dimension_numbers<[1], [0], [0], [1], [0, 0, 1, 1], [], []>} : vector<8x128xf32>, vector<128x128xf32>, vector<8x128xf32> -> vector<8x128xf32>
    %107 = arith.addf %102, %106 : vector<8x128xf32>
    %c0_117 = arith.constant 0 : index
    %c0_118 = arith.constant 0 : index
    %108 = vector.load %arg8[%c0_117, %c0_118] : memref<8x128xf32, #tpu.memory_space<vmem>>, vector<8x128xf32>
    tpu.vector_store %arg8[%c0_117, %c0_118], %107 {strides = array<i32>} : memref<8x128xf32, #tpu.memory_space<vmem>>, vector<8x128xf32>,
    return
  }
  func.func @transform_0(%arg0: i32) -> (i32, i32, i32) {
    %c0_i32 = arith.constant 0 : i32
    %c0_i32_0 = arith.constant 0 : i32
    %c0_i32_1 = arith.constant 0 : i32
    return %arg0, %c0_i32, %c0_i32_0 : i32, i32, i32
  }
  func.func @transform_1(%arg0: i32) -> (i32, i32, i32) {
    %c0_i32 = arith.constant 0 : i32
    %c0_i32_0 = arith.constant 0 : i32
    %c0_i32_1 = arith.constant 0 : i32
    %c0_i32_2 = arith.constant 0 : i32
    return %c0_i32, %c0_i32_0, %c0_i32_1 : i32, i32, i32
  }
  func.func @transform_2(%arg0: i32) -> (i32, i32) {
    %c0_i32 = arith.constant 0 : i32
    %c0_i32_0 = arith.constant 0 : i32
    %c0_i32_1 = arith.constant 0 : i32
    return %c0_i32, %c0_i32_0 : i32, i32
  }
  func.func @transform_3(%arg0: i32) -> (i32, i32, i32) {
    %c0_i32 = arith.constant 0 : i32
    %c0_i32_0 = arith.constant 0 : i32
    %c0_i32_1 = arith.constant 0 : i32
    %c0_i32_2 = arith.constant 0 : i32
    return %c0_i32, %c0_i32_0, %c0_i32_1 : i32, i32, i32
  }
  func.func @transform_4(%arg0: i32) -> (i32, i32) {
    %c0_i32 = arith.constant 0 : i32
    %c0_i32_0 = arith.constant 0 : i32
    %c0_i32_1 = arith.constant 0 : i32
    return %c0_i32, %c0_i32_0 : i32, i32
  }
  func.func @transform_5(%arg0: i32) -> (i32, i32, i32) {
    %c0_i32 = arith.constant 0 : i32
    %c0_i32_0 = arith.constant 0 : i32
    %c0_i32_1 = arith.constant 0 : i32
    %c0_i32_2 = arith.constant 0 : i32
    return %c0_i32, %c0_i32_0, %c0_i32_1 : i32, i32, i32
  }
  func.func @transform_6(%arg0: i32) -> (i32, i32) {
    %c0_i32 = arith.constant 0 : i32
    %c0_i32_0 = arith.constant 0 : i32
    %c0_i32_1 = arith.constant 0 : i32
    return %c0_i32, %c0_i32_0 : i32, i32
  }
  func.func @transform_7(%arg0: i32) -> (i32, i32) {
    %c0_i32 = arith.constant 0 : i32
    %c0_i32_0 = arith.constant 0 : i32
    return %arg0, %c0_i32 : i32, i32
  }
}

</mosaic_0001>

<llo_original>
// kernel: tpu_custom_call.1
$region0: #{tpu_custom_call.1}
  #allocation0 [shape = 'u32[]', space=smem, size = 0x4, offset = 0x4, fixed_abs, tag = 'smem constant byte address 0x4 - core index']
  #allocation1 [shape = 'u32[72,128]{1,0:T(1,128)}', space=vmem, size = 0x9000, scoped, tag = 'internal scratch']
  #allocation2 [shape = 'f32[8,24,128]{2,1,0:T(8,128)}', space=vmem, size = 0x18000, scoped, tag = 'scratch operand']
  #allocation3 [shape = 'f32[8,12,128]{2,1,0:T(8,128)}', space=vmem, size = 0x10000, scoped, tag = 'scratch operand']
  #allocation4 [shape = 'f32[64,128]{1,0:T(8,128)}', space=vmem, size = 0x8000, scoped, tag = 'scratch operand']
  #allocation5 [shape = 'f32[32,128]{1,0:T(8,128)}', space=vmem, size = 0x4000, scoped, tag = 'scratch operand']
  %s0 = inlined_call_operand.vmem [shape: bf16[16,28,28], index: 0, kind: input, shape index: {}]
  %s1 = inlined_call_operand.vmem [shape: bf16[5,28,128], index: 1, kind: input, shape index: {}]
  %s2 = inlined_call_operand.vmem [shape: f32[1,128], index: 2, kind: input, shape index: {}]
  %s3 = inlined_call_operand.hbm [shape: f32[5,128,128], index: 3, kind: input, shape index: {}]
  %s4 = inlined_call_operand.vmem [shape: f32[1,128], index: 4, kind: input, shape index: {}]
  %s5 = inlined_call_operand.hbm [shape: f32[4,128,128], index: 5, kind: input, shape index: {}]
  %s6 = inlined_call_operand.vmem [shape: f32[1,128], index: 6, kind: input, shape index: {}]
  %s7 = inlined_call_operand.hbm [shape: f32[16,128], index: 7, kind: output, shape index: {}]
  %s8 = sld [smem:[#allocation0]]
  $region69: #{tpu_custom_call.1} parent=0
    _
  %s10 = ssub.s32 1, %s8
  %s11 = scalar_select 0, %s10, %s8
  $region1: #{tpu_custom_call.1} parent=0
    #allocation6 [shape = 'u8[327680]{0}', space=vmem, size = 0x50000, scoped, tag = 'input window, operand 3, single buffered']
    #allocation7 [shape = 's32[2]{0}', space=sflag, size = 0x8, scoped, tag = 'scoped memory for tpu_custom_call.1']
    #allocation8 [shape = 's32[2]{0}', space=sflag, size = 0x8, scoped, tag = 'scoped memory for tpu_custom_call.1']
    #allocation9 [shape = 'u8[262144]{0}', space=vmem, size = 0x40000, scoped, tag = 'input window, operand 5, single buffered']
    #allocation10 [shape = 's32[1]{0}', space=sflag, size = 0x4, scoped, tag = 'scoped memory for tpu_custom_call.1']
    #allocation11 [shape = 'u8[8192]{0}', space=vmem, size = 0x2000, scoped, tag = 'output window, operand 0']
    %12 = vsyncpa [#allocation7], 0
    %13 = vsyncpa [#allocation10], 0
    %14 = vsyncpa [#allocation8], 0
    %s15 = scalar_lea.sflag [#allocation8], 1
    %16 = vsyncpa %s15, 0
    loop: start=0, step=1, limit=4
    $region2: #{tpu_custom_call.1} parent=1 // loop_pre_header
      _
    $region3: #{tpu_custom_call.1} parent=1 // loop_header
      %s18 = sphi 0, %s22
      %p19 = scmp.ge.s32.totalorder %s18, 4
      %s28 = sphi 0, %s30
      %s31 = sphi 0, %s28
      %s32 = sphi 0, %s31
      %s48 = sphi 0, %s32
      %s52 = sphi 0, %s52
      %s54 = sphi 0, %s52
      %s55 = sphi 0, %s54
      %s69 = sphi 0, %s55
      %s73 = sphi 0, %s73
      %s75 = sphi 0, %s73
      %s76 = sphi 0, %s75
      %s90 = sphi 0, %s76
      %s94 = sphi 0, %s94
      %s96 = sphi 0, %s94
      %s97 = sphi 0, %s96
      %s111 = sphi 0, %s97
      %s115 = sphi 0, %s115
      %s117 = sphi 0, %s115
      %s118 = sphi 0, %s117
      %s132 = sphi 0, %s118
      %s136 = sphi 0, %s136
      %s138 = sphi 0, %s136
      %s139 = sphi 0, %s138
      %s153 = sphi 0, %s139
      %s157 = sphi 0, %s157
      %s159 = sphi 0, %s157
      %s160 = sphi 0, %s159
      %s174 = sphi 0, %s160
      %s180 = sphi 0, %s182
      %s183 = sphi 0, %s180
      %s184 = sphi 0, %s183
      %s200 = sphi 0, %s184
    $region4: #{tpu_custom_call.1} parent=1 // loop_header_branch
      %21 = sbr.rel (%p19) target = $region8
    $region5: #{tpu_custom_call.1} parent=1 // loop_body
      %s23 = ssub.s32 %s18, 1
      %s24 = ssub.s32 %s18, 2
      %s25 = sadd.s32 %s18, 1
      %s26 = ssub.s32 %s18, %s25
      %p27 = scmp.eq.s32.totalorder %s26, 0
      %s29 = sadd.s32 %s28, 1
      %s30 = scalar_select %p27, %s28, %s29
      %p33 = pneg %p27
      %p34 = scmp.eq.s32.totalorder %s18, 1
      %p35 = por %p33, %p34
      %p36 = scmp.ne.s32.totalorder %s28, %s31
      %p37 = scmp.eq.s32.totalorder %s18, 0
      %p38 = por %p36, %p37
      %p39 = scmp.ne.s32.totalorder %s28, %s31
      %p40 = scmp.eq.s32.totalorder %s23, 1
      %p41 = por %p39, %p40
      %p42 = scmp.ne.s32.totalorder %s31, %s32
      %p43 = scmp.eq.s32.totalorder %s23, 0
      %p44 = por %p42, %p43
      %p45 = scmp.ne.s32.totalorder %s31, %s32
      %p46 = scmp.eq.s32.totalorder %s24, 1
      %p47 = por %p45, %p46
      %p49 = scmp.ne.s32.totalorder %s32, %s48
      %p50 = scmp.eq.s32.totalorder %s24, 0
      %p51 = por %p49, %p50
      %s53 = sadd.s32 %s52, 1
      %p56 = scmp.eq.s32.totalorder %s18, 1
      %p57 = scmp.ne.s32.totalorder %s52, %s54
      %p58 = scmp.eq.s32.totalorder %s18, 0
      %p59 = por %p57, %p58
      %p60 = scmp.ne.s32.totalorder %s52, %s54
      %p61 = scmp.eq.s32.totalorder %s23, 1
      %p62 = por %p60, %p61
      %p63 = scmp.ne.s32.totalorder %s54, %s55
      %p64 = scmp.eq.s32.totalorder %s23, 0
      %p65 = por %p63, %p64
      %p66 = scmp.ne.s32.totalorder %s54, %s55
      %p67 = scmp.eq.s32.totalorder %s24, 1
      %p68 = por %p66, %p67
      %p70 = scmp.ne.s32.totalorder %s55, %s69
      %p71 = scmp.eq.s32.totalorder %s24, 0
      %p72 = por %p70, %p71
      %s74 = sadd.s32 %s73, 1
      %p77 = scmp.eq.s32.totalorder %s18, 1
      %p78 = scmp.ne.s32.totalorder %s73, %s75
      %p79 = scmp.eq.s32.totalorder %s18, 0
      %p80 = por %p78, %p79
      %p81 = scmp.ne.s32.totalorder %s73, %s75
      %p82 = scmp.eq.s32.totalorder %s23, 1
      %p83 = por %p81, %p82
      %p84 = scmp.ne.s32.totalorder %s75, %s76
      %p85 = scmp.eq.s32.totalorder %s23, 0
      %p86 = por %p84, %p85
      %p87 = scmp.ne.s32.totalorder %s75, %s76
      %p88 = scmp.eq.s32.totalorder %s24, 1
      %p89 = por %p87, %p88
      %p91 = scmp.ne.s32.totalorder %s76, %s90
      %p92 = scmp.eq.s32.totalorder %s24, 0
      %p93 = por %p91, %p92
      %s95 = sadd.s32 %s94, 1
      %p98 = scmp.eq.s32.totalorder %s18, 1
      %p99 = scmp.ne.s32.totalorder %s94, %s96
      %p100 = scmp.eq.s32.totalorder %s18, 0
      %p101 = por %p99, %p100
      %p102 = scmp.ne.s32.totalorder %s94, %s96
      %p103 = scmp.eq.s32.totalorder %s23, 1
      %p104 = por %p102, %p103
      %p105 = scmp.ne.s32.totalorder %s96, %s97
      %p106 = scmp.eq.s32.totalorder %s23, 0
      %p107 = por %p105, %p106
      %p108 = scmp.ne.s32.totalorder %s96, %s97
      %p109 = scmp.eq.s32.totalorder %s24, 1
      %p110 = por %p108, %p109
      %p112 = scmp.ne.s32.totalorder %s97, %s111
      %p113 = scmp.eq.s32.totalorder %s24, 0
      %p114 = por %p112, %p113
      %s116 = sadd.s32 %s115, 1
      %p119 = scmp.eq.s32.totalorder %s18, 1
      %p120 = scmp.ne.s32.totalorder %s115, %s117
      %p121 = scmp.eq.s32.totalorder %s18, 0
      %p122 = por %p120, %p121
      %p123 = scmp.ne.s32.totalorder %s115, %s117
      %p124 = scmp.eq.s32.totalorder %s23, 1
      %p125 = por %p123, %p124
      %p126 = scmp.ne.s32.totalorder %s117, %s118
      %p127 = scmp.eq.s32.totalorder %s23, 0
      %p128 = por %p126, %p127
      %p129 = scmp.ne.s32.totalorder %s117, %s118
      %p130 = scmp.eq.s32.totalorder %s24, 1
      %p131 = por %p129, %p130
      %p133 = scmp.ne.s32.totalorder %s118, %s132
      %p134 = scmp.eq.s32.totalorder %s24, 0
      %p135 = por %p133, %p134
      %s137 = sadd.s32 %s136, 1
      %p140 = scmp.eq.s32.totalorder %s18, 1
      %p141 = scmp.ne.s32.totalorder %s136, %s138
      %p142 = scmp.eq.s32.totalorder %s18, 0
      %p143 = por %p141, %p142
      %p144 = scmp.ne.s32.totalorder %s136, %s138
      %p145 = scmp.eq.s32.totalorder %s23, 1
      %p146 = por %p144, %p145
      %p147 = scmp.ne.s32.totalorder %s138, %s139
      %p148 = scmp.eq.s32.totalorder %s23, 0
      %p149 = por %p147, %p148
      %p150 = scmp.ne.s32.totalorder %s138, %s139
      %p151 = scmp.eq.s32.totalorder %s24, 1
      %p152 = por %p150, %p151
      %p154 = scmp.ne.s32.totalorder %s139, %s153
      %p155 = scmp.eq.s32.totalorder %s24, 0
      %p156 = por %p154, %p155
      %s158 = sadd.s32 %s157, 1
      %p161 = scmp.eq.s32.totalorder %s18, 1
      %p162 = scmp.ne.s32.totalorder %s157, %s159
      %p163 = scmp.eq.s32.totalorder %s18, 0
      %p164 = por %p162, %p163
      %p165 = scmp.ne.s32.totalorder %s157, %s159
      %p166 = scmp.eq.s32.totalorder %s23, 1
      %p167 = por %p165, %p166
      %p168 = scmp.ne.s32.totalorder %s159, %s160
      %p169 = scmp.eq.s32.totalorder %s23, 0
      %p170 = por %p168, %p169
      %p171 = scmp.ne.s32.totalorder %s159, %s160
      %p172 = scmp.eq.s32.totalorder %s24, 1
      %p173 = por %p171, %p172
      %p175 = scmp.ne.s32.totalorder %s160, %s174
      %p176 = scmp.eq.s32.totalorder %s24, 0
      %p177 = por %p175, %p176
      %s178 = ssub.s32 %s18, %s25
      %p179 = scmp.eq.s32.totalorder %s178, 0
      %s181 = sadd.s32 %s180, 1
      %s182 = scalar_select %p179, %s180, %s181
      %p185 = pneg %p179
      %p186 = scmp.eq.s32.totalorder %s18, 1
      %p187 = por %p185, %p186
      %p188 = scmp.ne.s32.totalorder %s180, %s183
      %p189 = scmp.eq.s32.totalorder %s18, 0
      %p190 = por %p188, %p189
      %p191 = scmp.ne.s32.totalorder %s180, %s183
      %p192 = scmp.eq.s32.totalorder %s23, 1
      %p193 = por %p191, %p192
      %p194 = scmp.ne.s32.totalorder %s183, %s184
      %p195 = scmp.eq.s32.totalorder %s23, 0
      %p196 = por %p194, %p195
      %p197 = scmp.ne.s32.totalorder %s183, %s184
      %p198 = scmp.eq.s32.totalorder %s24, 1
      %p199 = por %p197, %p198
      %p201 = scmp.ne.s32.totalorder %s184, %s200
      %p202 = scmp.eq.s32.totalorder %s24, 0
      %p203 = por %p201, %p202
      %p204 = scmp.le.s32.totalorder 1, %s18
      %p205 = scmp.lt.s32.totalorder %s18, 3
      %p206 = pnand %p204, %p205
      %p207 = pneg %p206
      // Predicated region
      $region9: #{tpu_custom_call.1} parent=5 // pred_check
        _
      $region10: #{tpu_custom_call.1} parent=5 // pred_check_branch
        %209 = sbr.rel (%p206) target = $region12
      $region11: #{tpu_custom_call.1} parent=5 // pred_region
        %s210 = ssub.s32 %s18, 1
        // Predicated region
        $region13: #{tpu_custom_call.1} parent=11 // pred_check
          %p211 = pneg %p65
        $region14: #{tpu_custom_call.1} parent=11 // pred_check_branch
          %213 = sbr.rel (%p211) target = $region16
        $region15: #{tpu_custom_call.1} parent=11 // pred_region
          _
        $region16: #{tpu_custom_call.1} parent=11 // pred_fallthru
          _
        // Predicated region
        $region17: #{tpu_custom_call.1} parent=11 // pred_check
          %p214 = pneg %p86
        $region18: #{tpu_custom_call.1} parent=11 // pred_check_branch
          %216 = sbr.rel (%p214) target = $region20
        $region19: #{tpu_custom_call.1} parent=11 // pred_region
          _
        $region20: #{tpu_custom_call.1} parent=11 // pred_fallthru
          _
        // Predicated region
        $region21: #{tpu_custom_call.1} parent=11 // pred_check
          %p217 = pneg %p107
        $region22: #{tpu_custom_call.1} parent=11 // pred_check_branch
          %219 = sbr.rel (%p217) target = $region24
        $region23: #{tpu_custom_call.1} parent=11 // pred_region
          %221 = vsyncadd [#allocation7], 0
          %s222 = sshll.u32 %s3, 4
          %s223 = int_to_ptr.hbm [resolvable:$true] %s222
          %s224 = sshll.u32 [#allocation6], 4
          %s225 = int_to_ptr.vmem [resolvable:$true] %s224
          %230 = dma.hbm_to_vmem [thread:$0]  %s223, 10240, %s225, [#allocation7], 128, 128, 8
        $region24: #{tpu_custom_call.1} parent=11 // pred_fallthru
          _
        // Predicated region
        $region25: #{tpu_custom_call.1} parent=11 // pred_check
          %p231 = pneg %p128
        $region26: #{tpu_custom_call.1} parent=11 // pred_check_branch
          %233 = sbr.rel (%p231) target = $region28
        $region27: #{tpu_custom_call.1} parent=11 // pred_region
          _
        $region28: #{tpu_custom_call.1} parent=11 // pred_fallthru
          _
        // Predicated region
        $region29: #{tpu_custom_call.1} parent=11 // pred_check
          %p234 = pneg %p149
        $region30: #{tpu_custom_call.1} parent=11 // pred_check_branch
          %236 = sbr.rel (%p234) target = $region32
        $region31: #{tpu_custom_call.1} parent=11 // pred_region
          %238 = vsyncadd [#allocation10], 0
          %s239 = sshll.u32 %s5, 4
          %s240 = int_to_ptr.hbm [resolvable:$true] %s239
          %s241 = sshll.u32 [#allocation9], 4
          %s242 = int_to_ptr.vmem [resolvable:$true] %s241
          %247 = dma.hbm_to_vmem [thread:$0]  %s240, 8192, %s242, [#allocation10], 128, 128, 8
        $region32: #{tpu_custom_call.1} parent=11 // pred_fallthru
          _
        // Predicated region
        $region33: #{tpu_custom_call.1} parent=11 // pred_check
          %p248 = pneg %p170
        $region34: #{tpu_custom_call.1} parent=11 // pred_check_branch
          %250 = sbr.rel (%p248) target = $region36
        $region35: #{tpu_custom_call.1} parent=11 // pred_region
          _
        $region36: #{tpu_custom_call.1} parent=11 // pred_fallthru
          _
      $region12: #{tpu_custom_call.1} parent=5 // pred_fallthru
        _
      %p251 = scmp.lt.s32.totalorder %s18, 2
      // Predicated region
      $region37: #{tpu_custom_call.1} parent=5 // pred_check
        %p252 = pneg %p251
      $region38: #{tpu_custom_call.1} parent=5 // pred_check_branch
        %254 = sbr.rel (%p252) target = $region40
      $region39: #{tpu_custom_call.1} parent=5 // pred_region
        // Predicated region
        $region41: #{tpu_custom_call.1} parent=39 // pred_check
          %p255 = pneg %p38
        $region42: #{tpu_custom_call.1} parent=39 // pred_check_branch
          %257 = sbr.rel (%p255) target = $region44
        $region43: #{tpu_custom_call.1} parent=39 // pred_region
          %s258 = smul.u32 8, %s18
          %p259 = scmp.lt.s32.totalorder %s258, 15
          %s260 = scalar_select %p259, %s258, 15
          %s261 = smul.addr %s260, 4
          %s262 = smul.addr %s261, 4
          %s263 = scalar_lea.vmem %s0, %s262
          %s264 = smul.u32 8, %s18
        $region44: #{tpu_custom_call.1} parent=39 // pred_fallthru
          _
      $region40: #{tpu_custom_call.1} parent=5 // pred_fallthru
        _
      %p265 = scmp.le.s32.totalorder 1, %s18
      %p266 = scmp.lt.s32.totalorder %s18, 3
      %p267 = pnand %p265, %p266
      %p268 = pneg %p267
      // Predicated region
      $region45: #{tpu_custom_call.1} parent=5 // pred_check
        _
      $region46: #{tpu_custom_call.1} parent=5 // pred_check_branch
        %270 = sbr.rel (%p267) target = $region48
      $region47: #{tpu_custom_call.1} parent=5 // pred_region
        %s271 = ssub.s32 %s18, 1
        // Predicated region
        $region49: #{tpu_custom_call.1} parent=47 // pred_check
          %p272 = pneg %p107
        $region50: #{tpu_custom_call.1} parent=47 // pred_check_branch
          %274 = sbr.rel (%p272) target = $region52
        $region51: #{tpu_custom_call.1} parent=47 // pred_region
          %276 = dma.done [#allocation7], 10240
        $region52: #{tpu_custom_call.1} parent=47 // pred_fallthru
          _
        // Predicated region
        $region53: #{tpu_custom_call.1} parent=47 // pred_check
          %p277 = pneg %p149
        $region54: #{tpu_custom_call.1} parent=47 // pred_check_branch
          %279 = sbr.rel (%p277) target = $region56
        $region55: #{tpu_custom_call.1} parent=47 // pred_region
          %281 = dma.done [#allocation10], 8192
        $region56: #{tpu_custom_call.1} parent=47 // pred_fallthru
          _
        %s282 = smul.u32 8, %s23
        %p283 = scmp.lt.s32.totalorder %s282, 15
        %s284 = scalar_select %p283, %s282, 15
        %s285 = smul.addr %s284, 4
        %s286 = smul.addr %s285, 4
        %s287 = scalar_lea.vmem %s0, %s286
        %p288 = pneg %p44
        %p289 = pneg %p41
        %p290 = pneg %p65
        %p291 = pneg %p62
        %p292 = pneg %p86
        %p293 = pneg %p83
        %p294 = pneg %p107
        %p295 = pneg %p104
        %p296 = pneg %p128
        %p297 = pneg %p125
        %p298 = pneg %p149
        %p299 = pneg %p146
        %p300 = pneg %p170
        %p301 = pneg %p167
        %p302 = pneg %p196
        %p303 = pneg %p193
        %s304 = sand.u32 %s183, 1
        %s305 = scalar_lea.sflag [#allocation8], %s304
        %s306 = sand.u32 %s183, 1
        %s307 = smul.addr %s306, 8
        %s308 = scalar_lea.vmem [#allocation11], %s307
        %s309 = smul.u32 8, %s23
        %p310 = scmp.lt.s32.totalorder %s309, 15
        %s311 = scalar_select %p310, %s309, 15
        %s312 = smul.addr %s311, 4
        %s313 = smul.addr %s312, 4
        %s314 = scalar_lea.vmem %s0, %s313
        %s315 = smul.u32 8, %s23
        %v317 = vld [vmem:[%s2] sm:$0x1]
        %v319 = vperm.slane %v317, 0
        %v321 = vld [vmem:[%s314] sm:$0xf]
        %v322 = vld [vmem:[%s314 + $0x4] sm:$0xf]
        %v323 = vld [vmem:[%s314 + $0x8] sm:$0xf]
        %v324 = vld [vmem:[%s314 + $0x10] sm:$0xf]
        %v325 = vld [vmem:[%s314 + $0x14] sm:$0xf]
        %v326 = vld [vmem:[%s314 + $0x18] sm:$0xf]
        %v327 = vld [vmem:[%s314 + $0x20] sm:$0xf]
        %v328 = vld [vmem:[%s314 + $0x24] sm:$0xf]
        %v329 = vld [vmem:[%s314 + $0x28] sm:$0xf]
        %v330 = vld [vmem:[%s314 + $0x30] sm:$0xf]
        %v331 = vld [vmem:[%s314 + $0x34] sm:$0xf]
        %v332 = vld [vmem:[%s314 + $0x38] sm:$0xf]
        %v333 = vld [vmem:[%s314 + $0x40] sm:$0xf]
        %v334 = vld [vmem:[%s314 + $0x44] sm:$0xf]
        %v335 = vld [vmem:[%s314 + $0x48] sm:$0xf]
        %v336 = vld [vmem:[%s314 + $0x50] sm:$0xf]
        %v337 = vld [vmem:[%s314 + $0x54] sm:$0xf]
        %v338 = vld [vmem:[%s314 + $0x58] sm:$0xf]
        %v339 = vld [vmem:[%s314 + $0x60] sm:$0xf]
        %v340 = vld [vmem:[%s314 + $0x64] sm:$0xf]
        %v341 = vld [vmem:[%s314 + $0x68] sm:$0xf]
        %v342 = vld [vmem:[%s314 + $0x70] sm:$0xf]
        %v343 = vld [vmem:[%s314 + $0x74] sm:$0xf]
        %v344 = vld [vmem:[%s314 + $0x78] sm:$0xf]
        %v345 = vld [vmem:[%s1] sm:$0xf]
        %v346 = vld [vmem:[%s1 + $0x4] sm:$0xf]
        %v347 = vld [vmem:[%s1 + $0x8] sm:$0xf]
        %v348 = vld [vmem:[%s1 + $0xc] sm:$0x3]
        %v373 = vunpack.c.l.b16 %v321
        %v374 = vunpack.c.l.b16 %v322
        %v375 = vunpack.c.l.b16 %v323
        %v376 = vunpack.c.l.b16 %v324
        %v377 = vunpack.c.l.b16 %v325
        %v378 = vunpack.c.l.b16 %v326
        %v379 = vunpack.c.l.b16 %v327
        %v380 = vunpack.c.l.b16 %v328
        %v381 = vunpack.c.l.b16 %v329
        %v382 = vunpack.c.l.b16 %v330
        %v383 = vunpack.c.l.b16 %v331
        %v384 = vunpack.c.l.b16 %v332
        %v385 = vunpack.c.l.b16 %v333
        %v386 = vunpack.c.l.b16 %v334
        %v387 = vunpack.c.l.b16 %v335
        %v388 = vunpack.c.l.b16 %v336
        %v389 = vunpack.c.l.b16 %v337
        %v390 = vunpack.c.l.b16 %v338
        %v391 = vunpack.c.l.b16 %v339
        %v392 = vunpack.c.l.b16 %v340
        %v393 = vunpack.c.l.b16 %v341
        %v394 = vunpack.c.l.b16 %v342
        %v395 = vunpack.c.l.b16 %v343
        %v396 = vunpack.c.l.b16 %v344
        %v397 = vpack.c.b16 %v374, %v373
        %v398 = vpack.c.b16 %v376, %v375
        %v399 = vpack.c.b16 %v378, %v377
        %v400 = vpack.c.b16 %v380, %v379
        %v401 = vpack.c.b16 %v382, %v381
        %v402 = vpack.c.b16 %v384, %v383
        %v403 = vpack.c.b16 %v386, %v385
        %v404 = vpack.c.b16 %v388, %v387
        %v405 = vpack.c.b16 %v390, %v389
        %v406 = vpack.c.b16 %v392, %v391
        %v407 = vpack.c.b16 %v394, %v393
        %v408 = vpack.c.b16 %v396, %v395
        %v413 = vunpack.c.l.b16 %v345
        %v414 = vunpack.c.l.b16 %v346
        %v415 = vunpack.c.l.b16 %v347
        %v416 = vunpack.c.l.b16 %v348
        %v417 = vpack.c.b16 %v414, %v413
        %v418 = vpack.c.b16 %v416, %v415
        %vm420 = vcmask 228352
        %v422 = vsel %vm420, %v397, 0
        %v425 = vsel %vm420, %v398, 0
        %v428 = vsel %vm420, %v399, 0
        %v431 = vsel %vm420, %v400, 0
        %v434 = vsel %vm420, %v401, 0
        %v437 = vsel %vm420, %v402, 0
        %v440 = vsel %vm420, %v403, 0
        %v443 = vsel %vm420, %v404, 0
        %v446 = vsel %vm420, %v405, 0
        %v449 = vsel %vm420, %v406, 0
        %v452 = vsel %vm420, %v407, 0
        %v455 = vsel %vm420, %v408, 0
        %vm457 = vcmask 1045504
        %v459 = vsel %vm457, %v418, 0
        %461 = vmatpush.bf16.msra.mxu0 0
        %462 = vmatpush.bf16.msra.mxu0 0
        %463 = vmatpush.bf16.msra.mxu0 0
        %464 = vmatpush.bf16.msra.mxu0 0
        %465 = vmatpush.bf16.msra.mxu0 0
        %466 = vmatpush.bf16.msra.mxu0 0
        %467 = vmatpush.bf16.msra.mxu0 %v459
        %468 = vmatpush.bf16.msra.mxu0 %v417
        %469 = vmatmul.bf16.gmra.mxu0 %v422
        %v470 = vpop.f32.mrf.mxu0
        %v471 = vadd.f32 0.0, %v470
        %v472 = vpop.f32.mrf.mxu0
        %v473 = vadd.f32 0.0, %v472
        %474 = vmatmul.bf16.gmra.mxu0 %v425
        %v475 = vpop.f32.mrf.mxu0
        %v476 = vadd.f32 0.0, %v475
        %v477 = vpop.f32.mrf.mxu0
        %v478 = vadd.f32 0.0, %v477
        %479 = vmatmul.bf16.gmra.mxu0 %v428
        %v480 = vpop.f32.mrf.mxu0
        %v481 = vadd.f32 0.0, %v480
        %v482 = vpop.f32.mrf.mxu0
        %v483 = vadd.f32 0.0, %v482
        %484 = vmatmul.bf16.gmra.mxu0 %v431
        %v485 = vpop.f32.mrf.mxu0
        %v486 = vadd.f32 0.0, %v485
        %v487 = vpop.f32.mrf.mxu0
        %v488 = vadd.f32 0.0, %v487
        %489 = vmatmul.bf16.gmra.mxu0 %v434
        %v490 = vpop.f32.mrf.mxu0
        %v491 = vadd.f32 0.0, %v490
        %v492 = vpop.f32.mrf.mxu0
        %v493 = vadd.f32 0.0, %v492
        %494 = vmatmul.bf16.gmra.mxu0 %v437
        %v495 = vpop.f32.mrf.mxu0
        %v496 = vadd.f32 0.0, %v495
        %v497 = vpop.f32.mrf.mxu0
        %v498 = vadd.f32 0.0, %v497
        %499 = vmatmul.bf16.gmra.mxu0 %v440
        %v500 = vpop.f32.mrf.mxu0
        %v501 = vadd.f32 0.0, %v500
        %v502 = vpop.f32.mrf.mxu0
        %v503 = vadd.f32 0.0, %v502
        %504 = vmatmul.bf16.gmra.mxu0 %v443
        %v505 = vpop.f32.mrf.mxu0
        %v506 = vadd.f32 0.0, %v505
        %v507 = vpop.f32.mrf.mxu0
        %v508 = vadd.f32 0.0, %v507
        %509 = vmatmul.bf16.gmra.mxu0 %v446
        %v510 = vpop.f32.mrf.mxu0
        %v511 = vadd.f32 0.0, %v510
        %v512 = vpop.f32.mrf.mxu0
        %v513 = vadd.f32 0.0, %v512
        %514 = vmatmul.bf16.gmra.mxu0 %v449
        %v515 = vpop.f32.mrf.mxu0
        %v516 = vadd.f32 0.0, %v515
        %v517 = vpop.f32.mrf.mxu0
        %v518 = vadd.f32 0.0, %v517
        %519 = vmatmul.bf16.gmra.mxu0 %v452
        %v520 = vpop.f32.mrf.mxu0
        %v521 = vadd.f32 0.0, %v520
        %v522 = vpop.f32.mrf.mxu0
        %v523 = vadd.f32 0.0, %v522
        %524 = vmatmul.bf16.gmra.mxu0 %v455
        %v525 = vpop.f32.mrf.mxu0
        %v526 = vadd.f32 0.0, %v525
        %v527 = vpop.f32.mrf.mxu0
        %v528 = vadd.f32 0.0, %v527
        %529 = vdwg.mxu0
        %v530 = vadd.f32 %v319, %v471
        %v531 = vadd.f32 %v319, %v473
        %v532 = vadd.f32 %v319, %v476
        %v533 = vadd.f32 %v319, %v478
        %v534 = vadd.f32 %v319, %v481
        %v535 = vadd.f32 %v319, %v483
        %v536 = vadd.f32 %v319, %v486
        %v537 = vadd.f32 %v319, %v488
        %v538 = vadd.f32 %v319, %v491
        %v539 = vadd.f32 %v319, %v493
        %v540 = vadd.f32 %v319, %v496
        %v541 = vadd.f32 %v319, %v498
        %v542 = vadd.f32 %v319, %v501
        %v543 = vadd.f32 %v319, %v503
        %v544 = vadd.f32 %v319, %v506
        %v545 = vadd.f32 %v319, %v508
        %v546 = vadd.f32 %v319, %v511
        %v547 = vadd.f32 %v319, %v513
        %v548 = vadd.f32 %v319, %v516
        %v549 = vadd.f32 %v319, %v518
        %v550 = vadd.f32 %v319, %v521
        %v551 = vadd.f32 %v319, %v523
        %v552 = vadd.f32 %v319, %v526
        %v553 = vadd.f32 %v319, %v528
        %v554 = vld [vmem:[%s314] sm:$0xf]
        %v555 = vld [vmem:[%s314 + $0x4] sm:$0xf]
        %v556 = vld [vmem:[%s314 + $0x8] sm:$0xf]
        %v557 = vld [vmem:[%s314 + $0xc] sm:$0x1]
        %v558 = vld [vmem:[%s314 + $0x10] sm:$0xf]
        %v559 = vld [vmem:[%s314 + $0x14] sm:$0xf]
        %v560 = vld [vmem:[%s314 + $0x18] sm:$0xf]
        %v561 = vld [vmem:[%s314 + $0x1c] sm:$0x1]
        %v562 = vld [vmem:[%s314 + $0x20] sm:$0xf]
        %v563 = vld [vmem:[%s314 + $0x24] sm:$0xf]
        %v564 = vld [vmem:[%s314 + $0x28] sm:$0xf]
        %v565 = vld [vmem:[%s314 + $0x2c] sm:$0x1]
        %v566 = vld [vmem:[%s314 + $0x30] sm:$0xf]
        %v567 = vld [vmem:[%s314 + $0x34] sm:$0xf]
        %v568 = vld [vmem:[%s314 + $0x38] sm:$0xf]
        %v569 = vld [vmem:[%s314 + $0x3c] sm:$0x1]
        %v570 = vld [vmem:[%s314 + $0x40] sm:$0xf]
        %v571 = vld [vmem:[%s314 + $0x44] sm:$0xf]
        %v572 = vld [vmem:[%s314 + $0x48] sm:$0xf]
        %v573 = vld [vmem:[%s314 + $0x4c] sm:$0x1]
        %v574 = vld [vmem:[%s314 + $0x50] sm:$0xf]
        %v575 = vld [vmem:[%s314 + $0x54] sm:$0xf]
        %v576 = vld [vmem:[%s314 + $0x58] sm:$0xf]
        %v577 = vld [vmem:[%s314 + $0x5c] sm:$0x1]
        %v578 = vld [vmem:[%s314 + $0x60] sm:$0xf]
        %v579 = vld [vmem:[%s314 + $0x64] sm:$0xf]
        %v580 = vld [vmem:[%s314 + $0x68] sm:$0xf]
        %v581 = vld [vmem:[%s314 + $0x6c] sm:$0x1]
        %v582 = vld [vmem:[%s314 + $0x70] sm:$0xf]
        %v583 = vld [vmem:[%s314 + $0x74] sm:$0xf]
        %v584 = vld [vmem:[%s314 + $0x78] sm:$0xf]
        %v585 = vld [vmem:[%s314 + $0x7c] sm:$0x1]
        %vm586 = vsmask.f32 3328
        %vm587 = vsmask.f32 7440
        %vm588 = vmor %vm586, %vm587
        %v590 = vshrl.u32 %v554, 16
        %v592 = vrot.slane %v590, 4
        %v593 = vshll.u32 %v554, 16
        %v595 = vrot.slane %v593, 5
        %v596 = vor.u32 %v592, %v595
        %v597 = vrot.slane %v596, 4
        %v599 = vshll.u32 %v555, 16
        %v601 = vrot.slane %v599, 5
        %v602 = vsel %vm588, %v597, %v601
        %v603 = vshrl.u32 %v555, 16
        %v605 = vrot.slane %v603, 4
        %v606 = vor.u32 %v605, %v601
        %v607 = vrot.slane %v606, 4
        %v609 = vshll.u32 %v556, 16
        %v611 = vrot.slane %v609, 5
        %v612 = vsel %vm588, %v607, %v611
        %v613 = vshrl.u32 %v556, 16
        %v615 = vrot.slane %v613, 4
        %v616 = vor.u32 %v615, %v611
        %v617 = vrot.slane %v616, 4
        %v619 = vshll.u32 %v557, 16
        %v621 = vrot.slane %v619, 5
        %v622 = vsel %vm588, %v617, %v621
        %v624 = vshrl.u32 %v558, 16
        %v626 = vrot.slane %v624, 4
        %v627 = vshll.u32 %v558, 16
        %v629 = vrot.slane %v627, 5
        %v630 = vor.u32 %v626, %v629
        %v631 = vrot.slane %v630, 4
        %v633 = vshll.u32 %v559, 16
        %v635 = vrot.slane %v633, 5
        %v636 = vsel %vm588, %v631, %v635
        %v637 = vshrl.u32 %v559, 16
        %v639 = vrot.slane %v637, 4
        %v640 = vor.u32 %v639, %v635
        %v641 = vrot.slane %v640, 4
        %v643 = vshll.u32 %v560, 16
        %v645 = vrot.slane %v643, 5
        %v646 = vsel %vm588, %v641, %v645
        %v647 = vshrl.u32 %v560, 16
        %v649 = vrot.slane %v647, 4
        %v650 = vor.u32 %v649, %v645
        %v651 = vrot.slane %v650, 4
        %v653 = vshll.u32 %v561, 16
        %v655 = vrot.slane %v653, 5
        %v656 = vsel %vm588, %v651, %v655
        %v658 = vshrl.u32 %v562, 16
        %v660 = vrot.slane %v658, 4
        %v661 = vshll.u32 %v562, 16
        %v663 = vrot.slane %v661, 5
        %v664 = vor.u32 %v660, %v663
        %v665 = vrot.slane %v664, 4
        %v667 = vshll.u32 %v563, 16
        %v669 = vrot.slane %v667, 5
        %v670 = vsel %vm588, %v665, %v669
        %v671 = vshrl.u32 %v563, 16
        %v673 = vrot.slane %v671, 4
        %v674 = vor.u32 %v673, %v669
        %v675 = vrot.slane %v674, 4
        %v677 = vshll.u32 %v564, 16
        %v679 = vrot.slane %v677, 5
        %v680 = vsel %vm588, %v675, %v679
        %v681 = vshrl.u32 %v564, 16
        %v683 = vrot.slane %v681, 4
        %v684 = vor.u32 %v683, %v679
        %v685 = vrot.slane %v684, 4
        %v687 = vshll.u32 %v565, 16
        %v689 = vrot.slane %v687, 5
        %v690 = vsel %vm588, %v685, %v689
        %v692 = vshrl.u32 %v566, 16
        %v694 = vrot.slane %v692, 4
        %v695 = vshll.u32 %v566, 16
        %v697 = vrot.slane %v695, 5
        %v698 = vor.u32 %v694, %v697
        %v699 = vrot.slane %v698, 4
        %v701 = vshll.u32 %v567, 16
        %v703 = vrot.slane %v701, 5
        %v704 = vsel %vm588, %v699, %v703
        %v705 = vshrl.u32 %v567, 16
        %v707 = vrot.slane %v705, 4
        %v708 = vor.u32 %v707, %v703
        %v709 = vrot.slane %v708, 4
        %v711 = vshll.u32 %v568, 16
        %v713 = vrot.slane %v711, 5
        %v714 = vsel %vm588, %v709, %v713
        %v715 = vshrl.u32 %v568, 16
        %v717 = vrot.slane %v715, 4
        %v718 = vor.u32 %v717, %v713
        %v719 = vrot.slane %v718, 4
        %v721 = vshll.u32 %v569, 16
        %v723 = vrot.slane %v721, 5
        %v724 = vsel %vm588, %v719, %v723
        %v726 = vshrl.u32 %v570, 16
        %v728 = vrot.slane %v726, 4
        %v729 = vshll.u32 %v570, 16
        %v731 = vrot.slane %v729, 5
        %v732 = vor.u32 %v728, %v731
        %v733 = vrot.slane %v732, 4
        %v735 = vshll.u32 %v571, 16
        %v737 = vrot.slane %v735, 5
        %v738 = vsel %vm588, %v733, %v737
        %v739 = vshrl.u32 %v571, 16
        %v741 = vrot.slane %v739, 4
        %v742 = vor.u32 %v741, %v737
        %v743 = vrot.slane %v742, 4
        %v745 = vshll.u32 %v572, 16
        %v747 = vrot.slane %v745, 5
        %v748 = vsel %vm588, %v743, %v747
        %v749 = vshrl.u32 %v572, 16
        %v751 = vrot.slane %v749, 4
        %v752 = vor.u32 %v751, %v747
        %v753 = vrot.slane %v752, 4
        %v755 = vshll.u32 %v573, 16
        %v757 = vrot.slane %v755, 5
        %v758 = vsel %vm588, %v753, %v757
        %v760 = vshrl.u32 %v574, 16
        %v762 = vrot.slane %v760, 4
        %v763 = vshll.u32 %v574, 16
        %v765 = vrot.slane %v763, 5
        %v766 = vor.u32 %v762, %v765
        %v767 = vrot.slane %v766, 4
        %v769 = vshll.u32 %v575, 16
        %v771 = vrot.slane %v769, 5
        %v772 = vsel %vm588, %v767, %v771
        %v773 = vshrl.u32 %v575, 16
        %v775 = vrot.slane %v773, 4
        %v776 = vor.u32 %v775, %v771
        %v777 = vrot.slane %v776, 4
        %v779 = vshll.u32 %v576, 16
        %v781 = vrot.slane %v779, 5
        %v782 = vsel %vm588, %v777, %v781
        %v783 = vshrl.u32 %v576, 16
        %v785 = vrot.slane %v783, 4
        %v786 = vor.u32 %v785, %v781
        %v787 = vrot.slane %v786, 4
        %v789 = vshll.u32 %v577, 16
        %v791 = vrot.slane %v789, 5
        %v792 = vsel %vm588, %v787, %v791
        %v794 = vshrl.u32 %v578, 16
        %v796 = vrot.slane %v794, 4
        %v797 = vshll.u32 %v578, 16
        %v799 = vrot.slane %v797, 5
        %v800 = vor.u32 %v796, %v799
        %v801 = vrot.slane %v800, 4
        %v803 = vshll.u32 %v579, 16
        %v805 = vrot.slane %v803, 5
        %v806 = vsel %vm588, %v801, %v805
        %v807 = vshrl.u32 %v579, 16
        %v809 = vrot.slane %v807, 4
        %v810 = vor.u32 %v809, %v805
        %v811 = vrot.slane %v810, 4
        %v813 = vshll.u32 %v580, 16
        %v815 = vrot.slane %v813, 5
        %v816 = vsel %vm588, %v811, %v815
        %v817 = vshrl.u32 %v580, 16
        %v819 = vrot.slane %v817, 4
        %v820 = vor.u32 %v819, %v815
        %v821 = vrot.slane %v820, 4
        %v823 = vshll.u32 %v581, 16
        %v825 = vrot.slane %v823, 5
        %v826 = vsel %vm588, %v821, %v825
        %v828 = vshrl.u32 %v582, 16
        %v830 = vrot.slane %v828, 4
        %v831 = vshll.u32 %v582, 16
        %v833 = vrot.slane %v831, 5
        %v834 = vor.u32 %v830, %v833
        %v835 = vrot.slane %v834, 4
        %v837 = vshll.u32 %v583, 16
        %v839 = vrot.slane %v837, 5
        %v840 = vsel %vm588, %v835, %v839
        %v841 = vshrl.u32 %v583, 16
        %v843 = vrot.slane %v841, 4
        %v844 = vor.u32 %v843, %v839
        %v845 = vrot.slane %v844, 4
        %v847 = vshll.u32 %v584, 16
        %v849 = vrot.slane %v847, 5
        %v850 = vsel %vm588, %v845, %v849
        %v851 = vshrl.u32 %v584, 16
        %v853 = vrot.slane %v851, 4
        %v854 = vor.u32 %v853, %v849
        %v855 = vrot.slane %v854, 4
        %v857 = vshll.u32 %v585, 16
        %v859 = vrot.slane %v857, 5
        %v860 = vsel %vm588, %v855, %v859
        %s861 = scalar_lea.vmem %s1, 16
        %v862 = vld [vmem:[%s861] sm:$0xf]
        %v863 = vld [vmem:[%s861 + $0x4] sm:$0xf]
        %v864 = vld [vmem:[%s861 + $0x8] sm:$0xf]
        %v865 = vld [vmem:[%s861 + $0xc] sm:$0x3]
        %v866 = vunpack.c.l.b16 %v602
        %v867 = vunpack.c.l.b16 %v612
        %v868 = vunpack.c.l.b16 %v622
        %v869 = vunpack.c.l.b16 %v636
        %v870 = vunpack.c.l.b16 %v646
        %v871 = vunpack.c.l.b16 %v656
        %v872 = vunpack.c.l.b16 %v670
        %v873 = vunpack.c.l.b16 %v680
        %v874 = vunpack.c.l.b16 %v690
        %v875 = vunpack.c.l.b16 %v704
        %v876 = vunpack.c.l.b16 %v714
        %v877 = vunpack.c.l.b16 %v724
        %v878 = vunpack.c.l.b16 %v738
        %v879 = vunpack.c.l.b16 %v748
        %v880 = vunpack.c.l.b16 %v758
        %v881 = vunpack.c.l.b16 %v772
        %v882 = vunpack.c.l.b16 %v782
        %v883 = vunpack.c.l.b16 %v792
        %v884 = vunpack.c.l.b16 %v806
        %v885 = vunpack.c.l.b16 %v816
        %v886 = vunpack.c.l.b16 %v826
        %v887 = vunpack.c.l.b16 %v840
        %v888 = vunpack.c.l.b16 %v850
        %v889 = vunpack.c.l.b16 %v860
        %v890 = vpack.c.b16 %v867, %v866
        %v891 = vpack.c.b16 %v869, %v868
        %v892 = vpack.c.b16 %v871, %v870
        %v893 = vpack.c.b16 %v873, %v872
        %v894 = vpack.c.b16 %v875, %v874
        %v895 = vpack.c.b16 %v877, %v876
        %v896 = vpack.c.b16 %v879, %v878
        %v897 = vpack.c.b16 %v881, %v880
        %v898 = vpack.c.b16 %v883, %v882
        %v899 = vpack.c.b16 %v885, %v884
        %v900 = vpack.c.b16 %v887, %v886
        %v901 = vpack.c.b16 %v889, %v888
        %v906 = vunpack.c.l.b16 %v862
        %v907 = vunpack.c.l.b16 %v863
        %v908 = vunpack.c.l.b16 %v864
        %v909 = vunpack.c.l.b16 %v865
        %v910 = vpack.c.b16 %v907, %v906
        %v911 = vpack.c.b16 %v909, %v908
        %v914 = vsel %vm420, %v890, 0
        %v917 = vsel %vm420, %v891, 0
        %v920 = vsel %vm420, %v892, 0
        %v923 = vsel %vm420, %v893, 0
        %v926 = vsel %vm420, %v894, 0
        %v929 = vsel %vm420, %v895, 0
        %v932 = vsel %vm420, %v896, 0
        %v935 = vsel %vm420, %v897, 0
        %v938 = vsel %vm420, %v898, 0
        %v941 = vsel %vm420, %v899, 0
        %v944 = vsel %vm420, %v900, 0
        %v947 = vsel %vm420, %v901, 0
        %v950 = vsel %vm457, %v911, 0
        %952 = vmatpush.bf16.msra.mxu0 0
        %953 = vmatpush.bf16.msra.mxu0 0
        %954 = vmatpush.bf16.msra.mxu0 0
        %955 = vmatpush.bf16.msra.mxu0 0
        %956 = vmatpush.bf16.msra.mxu0 0
        %957 = vmatpush.bf16.msra.mxu0 0
        %958 = vmatpush.bf16.msra.mxu0 %v950
        %959 = vmatpush.bf16.msra.mxu0 %v910
        %960 = vmatmul.bf16.gmra.mxu0 %v914
        %v961 = vpop.f32.mrf.mxu0
        %v962 = vadd.f32 0.0, %v961
        %v963 = vpop.f32.mrf.mxu0
        %v964 = vadd.f32 0.0, %v963
        %965 = vmatmul.bf16.gmra.mxu0 %v917
        %v966 = vpop.f32.mrf.mxu0
        %v967 = vadd.f32 0.0, %v966
        %v968 = vpop.f32.mrf.mxu0
        %v969 = vadd.f32 0.0, %v968
        %970 = vmatmul.bf16.gmra.mxu0 %v920
        %v971 = vpop.f32.mrf.mxu0
        %v972 = vadd.f32 0.0, %v971
        %v973 = vpop.f32.mrf.mxu0
        %v974 = vadd.f32 0.0, %v973
        %975 = vmatmul.bf16.gmra.mxu0 %v923
        %v976 = vpop.f32.mrf.mxu0
        %v977 = vadd.f32 0.0, %v976
        %v978 = vpop.f32.mrf.mxu0
        %v979 = vadd.f32 0.0, %v978
        %980 = vmatmul.bf16.gmra.mxu0 %v926
        %v981 = vpop.f32.mrf.mxu0
        %v982 = vadd.f32 0.0, %v981
        %v983 = vpop.f32.mrf.mxu0
        %v984 = vadd.f32 0.0, %v983
        %985 = vmatmul.bf16.gmra.mxu0 %v929
        %v986 = vpop.f32.mrf.mxu0
        %v987 = vadd.f32 0.0, %v986
        %v988 = vpop.f32.mrf.mxu0
        %v989 = vadd.f32 0.0, %v988
        %990 = vmatmul.bf16.gmra.mxu0 %v932
        %v991 = vpop.f32.mrf.mxu0
        %v992 = vadd.f32 0.0, %v991
        %v993 = vpop.f32.mrf.mxu0
        %v994 = vadd.f32 0.0, %v993
        %995 = vmatmul.bf16.gmra.mxu0 %v935
        %v996 = vpop.f32.mrf.mxu0
        %v997 = vadd.f32 0.0, %v996
        %v998 = vpop.f32.mrf.mxu0
        %v999 = vadd.f32 0.0, %v998
        %1000 = vmatmul.bf16.gmra.mxu0 %v938
        %v1001 = vpop.f32.mrf.mxu0
        %v1002 = vadd.f32 0.0, %v1001
        %v1003 = vpop.f32.mrf.mxu0
        %v1004 = vadd.f32 0.0, %v1003
        %1005 = vmatmul.bf16.gmra.mxu0 %v941
        %v1006 = vpop.f32.mrf.mxu0
        %v1007 = vadd.f32 0.0, %v1006
        %v1008 = vpop.f32.mrf.mxu0
        %v1009 = vadd.f32 0.0, %v1008
        %1010 = vmatmul.bf16.gmra.mxu0 %v944
        %v1011 = vpop.f32.mrf.mxu0
        %v1012 = vadd.f32 0.0, %v1011
        %v1013 = vpop.f32.mrf.mxu0
        %v1014 = vadd.f32 0.0, %v1013
        %1015 = vmatmul.bf16.gmra.mxu0 %v947
        %v1016 = vpop.f32.mrf.mxu0
        %v1017 = vadd.f32 0.0, %v1016
        %v1018 = vpop.f32.mrf.mxu0
        %v1019 = vadd.f32 0.0, %v1018
        %1020 = vdwg.mxu0
        %v1021 = vadd.f32 %v530, %v962
        %v1022 = vadd.f32 %v531, %v964
        %v1023 = vadd.f32 %v532, %v967
        %v1024 = vadd.f32 %v533, %v969
        %v1025 = vadd.f32 %v534, %v972
        %v1026 = vadd.f32 %v535, %v974
        %v1027 = vadd.f32 %v536, %v977
        %v1028 = vadd.f32 %v537, %v979
        %v1029 = vadd.f32 %v538, %v982
        %v1030 = vadd.f32 %v539, %v984
        %v1031 = vadd.f32 %v540, %v987
        %v1032 = vadd.f32 %v541, %v989
        %v1033 = vadd.f32 %v542, %v992
        %v1034 = vadd.f32 %v543, %v994
        %v1035 = vadd.f32 %v544, %v997
        %v1036 = vadd.f32 %v545, %v999
        %v1037 = vadd.f32 %v546, %v1002
        %v1038 = vadd.f32 %v547, %v1004
        %v1039 = vadd.f32 %v548, %v1007
        %v1040 = vadd.f32 %v549, %v1009
        %v1041 = vadd.f32 %v550, %v1012
        %v1042 = vadd.f32 %v551, %v1014
        %v1043 = vadd.f32 %v552, %v1017
        %v1044 = vadd.f32 %v553, %v1019
        %v1045 = vld [vmem:[%s314] sm:$0xe]
        %v1046 = vld [vmem:[%s314 + $0x10] sm:$0xe]
        %v1047 = vld [vmem:[%s314 + $0x20] sm:$0xe]
        %v1048 = vld [vmem:[%s314 + $0x30] sm:$0xe]
        %v1049 = vld [vmem:[%s314 + $0x40] sm:$0xe]
        %v1050 = vld [vmem:[%s314 + $0x50] sm:$0xe]
        %v1051 = vld [vmem:[%s314 + $0x60] sm:$0xe]
        %v1052 = vld [vmem:[%s314 + $0x70] sm:$0xe]
        %vm1085 = vcmask 1042432
        %vm1086 = vcmask 1046532
        %vm1087 = vmor %vm1085, %vm1086
        %v1088 = vrot.slane %v1045, 5
        %v1089 = vrot.slane %v1088, 4
        %v1090 = vrot.slane %v555, 5
        %v1091 = vsel %vm1087, %v1089, %v1090
        %v1092 = vrot.slane %v1090, 4
        %v1093 = vrot.slane %v556, 5
        %v1094 = vsel %vm1087, %v1092, %v1093
        %v1095 = vrot.slane %v1093, 4
        %v1096 = vrot.slane %v557, 5
        %v1097 = vsel %vm1087, %v1095, %v1096
        %v1098 = vrot.slane %v1046, 5
        %v1099 = vrot.slane %v1098, 4
        %v1100 = vrot.slane %v559, 5
        %v1101 = vsel %vm1087, %v1099, %v1100
        %v1102 = vrot.slane %v1100, 4
        %v1103 = vrot.slane %v560, 5
        %v1104 = vsel %vm1087, %v1102, %v1103
        %v1105 = vrot.slane %v1103, 4
        %v1106 = vrot.slane %v561, 5
        %v1107 = vsel %vm1087, %v1105, %v1106
        %v1108 = vrot.slane %v1047, 5
        %v1109 = vrot.slane %v1108, 4
        %v1110 = vrot.slane %v563, 5
        %v1111 = vsel %vm1087, %v1109, %v1110
        %v1112 = vrot.slane %v1110, 4
        %v1113 = vrot.slane %v564, 5
        %v1114 = vsel %vm1087, %v1112, %v1113
        %v1115 = vrot.slane %v1113, 4
        %v1116 = vrot.slane %v565, 5
        %v1117 = vsel %vm1087, %v1115, %v1116
        %v1118 = vrot.slane %v1048, 5
        %v1119 = vrot.slane %v1118, 4
        %v1120 = vrot.slane %v567, 5
        %v1121 = vsel %vm1087, %v1119, %v1120
        %v1122 = vrot.slane %v1120, 4
        %v1123 = vrot.slane %v568, 5
        %v1124 = vsel %vm1087, %v1122, %v1123
        %v1125 = vrot.slane %v1123, 4
        %v1126 = vrot.slane %v569, 5
        %v1127 = vsel %vm1087, %v1125, %v1126
        %v1128 = vrot.slane %v1049, 5
        %v1129 = vrot.slane %v1128, 4
        %v1130 = vrot.slane %v571, 5
        %v1131 = vsel %vm1087, %v1129, %v1130
        %v1132 = vrot.slane %v1130, 4
        %v1133 = vrot.slane %v572, 5
        %v1134 = vsel %vm1087, %v1132, %v1133
        %v1135 = vrot.slane %v1133, 4
        %v1136 = vrot.slane %v573, 5
        %v1137 = vsel %vm1087, %v1135, %v1136
        %v1138 = vrot.slane %v1050, 5
        %v1139 = vrot.slane %v1138, 4
        %v1140 = vrot.slane %v575, 5
        %v1141 = vsel %vm1087, %v1139, %v1140
        %v1142 = vrot.slane %v1140, 4
        %v1143 = vrot.slane %v576, 5
        %v1144 = vsel %vm1087, %v1142, %v1143
        %v1145 = vrot.slane %v1143, 4
        %v1146 = vrot.slane %v577, 5
        %v1147 = vsel %vm1087, %v1145, %v1146
        %v1148 = vrot.slane %v1051, 5
        %v1149 = vrot.slane %v1148, 4
        %v1150 = vrot.slane %v579, 5
        %v1151 = vsel %vm1087, %v1149, %v1150
        %v1152 = vrot.slane %v1150, 4
        %v1153 = vrot.slane %v580, 5
        %v1154 = vsel %vm1087, %v1152, %v1153
        %v1155 = vrot.slane %v1153, 4
        %v1156 = vrot.slane %v581, 5
        %v1157 = vsel %vm1087, %v1155, %v1156
        %v1158 = vrot.slane %v1052, 5
        %v1159 = vrot.slane %v1158, 4
        %v1160 = vrot.slane %v583, 5
        %v1161 = vsel %vm1087, %v1159, %v1160
        %v1162 = vrot.slane %v1160, 4
        %v1163 = vrot.slane %v584, 5
        %v1164 = vsel %vm1087, %v1162, %v1163
        %v1165 = vrot.slane %v1163, 4
        %v1166 = vrot.slane %v585, 5
        %v1167 = vsel %vm1087, %v1165, %v1166
        %s1168 = scalar_lea.vmem %s1, 32
        %v1169 = vld [vmem:[%s1168] sm:$0xf]
        %v1170 = vld [vmem:[%s1168 + $0x4] sm:$0xf]
        %v1171 = vld [vmem:[%s1168 + $0x8] sm:$0xf]
        %v1172 = vld [vmem:[%s1168 + $0xc] sm:$0x3]
        %v1173 = vunpack.c.l.b16 %v1091
        %v1174 = vunpack.c.l.b16 %v1094
        %v1175 = vunpack.c.l.b16 %v1097
        %v1176 = vunpack.c.l.b16 %v1101
        %v1177 = vunpack.c.l.b16 %v1104
        %v1178 = vunpack.c.l.b16 %v1107
        %v1179 = vunpack.c.l.b16 %v1111
        %v1180 = vunpack.c.l.b16 %v1114
        %v1181 = vunpack.c.l.b16 %v1117
        %v1182 = vunpack.c.l.b16 %v1121
        %v1183 = vunpack.c.l.b16 %v1124
        %v1184 = vunpack.c.l.b16 %v1127
        %v1185 = vunpack.c.l.b16 %v1131
        %v1186 = vunpack.c.l.b16 %v1134
        %v1187 = vunpack.c.l.b16 %v1137
        %v1188 = vunpack.c.l.b16 %v1141
        %v1189 = vunpack.c.l.b16 %v1144
        %v1190 = vunpack.c.l.b16 %v1147
        %v1191 = vunpack.c.l.b16 %v1151
        %v1192 = vunpack.c.l.b16 %v1154
        %v1193 = vunpack.c.l.b16 %v1157
        %v1194 = vunpack.c.l.b16 %v1161
        %v1195 = vunpack.c.l.b16 %v1164
        %v1196 = vunpack.c.l.b16 %v1167
        %v1197 = vpack.c.b16 %v1174, %v1173
        %v1198 = vpack.c.b16 %v1176, %v1175
        %v1199 = vpack.c.b16 %v1178, %v1177
        %v1200 = vpack.c.b16 %v1180, %v1179
        %v1201 = vpack.c.b16 %v1182, %v1181
        %v1202 = vpack.c.b16 %v1184, %v1183
        %v1203 = vpack.c.b16 %v1186, %v1185
        %v1204 = vpack.c.b16 %v1188, %v1187
        %v1205 = vpack.c.b16 %v1190, %v1189
        %v1206 = vpack.c.b16 %v1192, %v1191
        %v1207 = vpack.c.b16 %v1194, %v1193
        %v1208 = vpack.c.b16 %v1196, %v1195
        %v1213 = vunpack.c.l.b16 %v1169
        %v1214 = vunpack.c.l.b16 %v1170
        %v1215 = vunpack.c.l.b16 %v1171
        %v1216 = vunpack.c.l.b16 %v1172
        %v1217 = vpack.c.b16 %v1214, %v1213
        %v1218 = vpack.c.b16 %v1216, %v1215
        %v1221 = vsel %vm420, %v1197, 0
        %v1224 = vsel %vm420, %v1198, 0
        %v1227 = vsel %vm420, %v1199, 0
        %v1230 = vsel %vm420, %v1200, 0
        %v1233 = vsel %vm420, %v1201, 0
        %v1236 = vsel %vm420, %v1202, 0
        %v1239 = vsel %vm420, %v1203, 0
        %v1242 = vsel %vm420, %v1204, 0
        %v1245 = vsel %vm420, %v1205, 0
        %v1248 = vsel %vm420, %v1206, 0
        %v1251 = vsel %vm420, %v1207, 0
        %v1254 = vsel %vm420, %v1208, 0
        %v1257 = vsel %vm457, %v1218, 0
        %1259 = vmatpush.bf16.msra.mxu0 0
        %1260 = vmatpush.bf16.msra.mxu0 0
        %1261 = vmatpush.bf16.msra.mxu0 0
        %1262 = vmatpush.bf16.msra.mxu0 0
        %1263 = vmatpush.bf16.msra.mxu0 0
        %1264 = vmatpush.bf16.msra.mxu0 0
        %1265 = vmatpush.bf16.msra.mxu0 %v1257
        %1266 = vmatpush.bf16.msra.mxu0 %v1217
        %1267 = vmatmul.bf16.gmra.mxu0 %v1221
        %v1268 = vpop.f32.mrf.mxu0
        %v1269 = vadd.f32 0.0, %v1268
        %v1270 = vpop.f32.mrf.mxu0
        %v1271 = vadd.f32 0.0, %v1270
        %1272 = vmatmul.bf16.gmra.mxu0 %v1224
        %v1273 = vpop.f32.mrf.mxu0
        %v1274 = vadd.f32 0.0, %v1273
        %v1275 = vpop.f32.mrf.mxu0
        %v1276 = vadd.f32 0.0, %v1275
        %1277 = vmatmul.bf16.gmra.mxu0 %v1227
        %v1278 = vpop.f32.mrf.mxu0
        %v1279 = vadd.f32 0.0, %v1278
        %v1280 = vpop.f32.mrf.mxu0
        %v1281 = vadd.f32 0.0, %v1280
        %1282 = vmatmul.bf16.gmra.mxu0 %v1230
        %v1283 = vpop.f32.mrf.mxu0
        %v1284 = vadd.f32 0.0, %v1283
        %v1285 = vpop.f32.mrf.mxu0
        %v1286 = vadd.f32 0.0, %v1285
        %1287 = vmatmul.bf16.gmra.mxu0 %v1233
        %v1288 = vpop.f32.mrf.mxu0
        %v1289 = vadd.f32 0.0, %v1288
        %v1290 = vpop.f32.mrf.mxu0
        %v1291 = vadd.f32 0.0, %v1290
        %1292 = vmatmul.bf16.gmra.mxu0 %v1236
        %v1293 = vpop.f32.mrf.mxu0
        %v1294 = vadd.f32 0.0, %v1293
        %v1295 = vpop.f32.mrf.mxu0
        %v1296 = vadd.f32 0.0, %v1295
        %1297 = vmatmul.bf16.gmra.mxu0 %v1239
        %v1298 = vpop.f32.mrf.mxu0
        %v1299 = vadd.f32 0.0, %v1298
        %v1300 = vpop.f32.mrf.mxu0
        %v1301 = vadd.f32 0.0, %v1300
        %1302 = vmatmul.bf16.gmra.mxu0 %v1242
        %v1303 = vpop.f32.mrf.mxu0
        %v1304 = vadd.f32 0.0, %v1303
        %v1305 = vpop.f32.mrf.mxu0
        %v1306 = vadd.f32 0.0, %v1305
        %1307 = vmatmul.bf16.gmra.mxu0 %v1245
        %v1308 = vpop.f32.mrf.mxu0
        %v1309 = vadd.f32 0.0, %v1308
        %v1310 = vpop.f32.mrf.mxu0
        %v1311 = vadd.f32 0.0, %v1310
        %1312 = vmatmul.bf16.gmra.mxu0 %v1248
        %v1313 = vpop.f32.mrf.mxu0
        %v1314 = vadd.f32 0.0, %v1313
        %v1315 = vpop.f32.mrf.mxu0
        %v1316 = vadd.f32 0.0, %v1315
        %1317 = vmatmul.bf16.gmra.mxu0 %v1251
        %v1318 = vpop.f32.mrf.mxu0
        %v1319 = vadd.f32 0.0, %v1318
        %v1320 = vpop.f32.mrf.mxu0
        %v1321 = vadd.f32 0.0, %v1320
        %1322 = vmatmul.bf16.gmra.mxu0 %v1254
        %v1323 = vpop.f32.mrf.mxu0
        %v1324 = vadd.f32 0.0, %v1323
        %v1325 = vpop.f32.mrf.mxu0
        %v1326 = vadd.f32 0.0, %v1325
        %1327 = vdwg.mxu0
        %v1328 = vadd.f32 %v1021, %v1269
        %v1329 = vadd.f32 %v1022, %v1271
        %v1330 = vadd.f32 %v1023, %v1274
        %v1331 = vadd.f32 %v1024, %v1276
        %v1332 = vadd.f32 %v1025, %v1279
        %v1333 = vadd.f32 %v1026, %v1281
        %v1334 = vadd.f32 %v1027, %v1284
        %v1335 = vadd.f32 %v1028, %v1286
        %v1336 = vadd.f32 %v1029, %v1289
        %v1337 = vadd.f32 %v1030, %v1291
        %v1338 = vadd.f32 %v1031, %v1294
        %v1339 = vadd.f32 %v1032, %v1296
        %v1340 = vadd.f32 %v1033, %v1299
        %v1341 = vadd.f32 %v1034, %v1301
        %v1342 = vadd.f32 %v1035, %v1304
        %v1343 = vadd.f32 %v1036, %v1306
        %v1344 = vadd.f32 %v1037, %v1309
        %v1345 = vadd.f32 %v1038, %v1311
        %v1346 = vadd.f32 %v1039, %v1314
        %v1347 = vadd.f32 %v1040, %v1316
        %v1348 = vadd.f32 %v1041, %v1319
        %v1349 = vadd.f32 %v1042, %v1321
        %v1350 = vadd.f32 %v1043, %v1324
        %v1351 = vadd.f32 %v1044, %v1326
        %v1352 = vld [vmem:[%s314 + $0xc] sm:$0x3]
        %v1353 = vld [vmem:[%s314 + $0x1c] sm:$0x3]
        %v1354 = vld [vmem:[%s314 + $0x2c] sm:$0x3]
        %v1355 = vld [vmem:[%s314 + $0x3c] sm:$0x3]
        %v1356 = vld [vmem:[%s314 + $0x4c] sm:$0x3]
        %v1357 = vld [vmem:[%s314 + $0x5c] sm:$0x3]
        %v1358 = vld [vmem:[%s314 + $0x6c] sm:$0x3]
        %v1359 = vld [vmem:[%s314 + $0x7c] sm:$0x3]
        %vm1360 = vsmask.f32 2304
        %vm1361 = vsmask.f32 6416
        %vm1362 = vmor %vm1360, %vm1361
        %v1364 = vshrl.u32 %v1045, 16
        %v1366 = vrot.slane %v1364, 5
        %v1367 = vshll.u32 %v1045, 16
        %v1369 = vrot.slane %v1367, 6
        %v1370 = vor.u32 %v1366, %v1369
        %v1371 = vrot.slane %v1370, 4
        %v1372 = vrot.slane %v603, 5
        %v1373 = vrot.slane %v599, 6
        %v1374 = vor.u32 %v1372, %v1373
        %v1375 = vsel %vm1362, %v1371, %v1374
        %v1376 = vrot.slane %v1374, 4
        %v1377 = vrot.slane %v613, 5
        %v1378 = vrot.slane %v609, 6
        %v1379 = vor.u32 %v1377, %v1378
        %v1380 = vsel %vm1362, %v1376, %v1379
        %v1381 = vrot.slane %v1379, 4
        %v1383 = vshrl.u32 %v1352, 16
        %v1385 = vrot.slane %v1383, 5
        %v1386 = vshll.u32 %v1352, 16
        %v1388 = vrot.slane %v1386, 6
        %v1389 = vor.u32 %v1385, %v1388
        %v1390 = vsel %vm1362, %v1381, %v1389
        %v1392 = vshrl.u32 %v1046, 16
        %v1394 = vrot.slane %v1392, 5
        %v1395 = vshll.u32 %v1046, 16
        %v1397 = vrot.slane %v1395, 6
        %v1398 = vor.u32 %v1394, %v1397
        %v1399 = vrot.slane %v1398, 4
        %v1400 = vrot.slane %v637, 5
        %v1401 = vrot.slane %v633, 6
        %v1402 = vor.u32 %v1400, %v1401
        %v1403 = vsel %vm1362, %v1399, %v1402
        %v1404 = vrot.slane %v1402, 4
        %v1405 = vrot.slane %v647, 5
        %v1406 = vrot.slane %v643, 6
        %v1407 = vor.u32 %v1405, %v1406
        %v1408 = vsel %vm1362, %v1404, %v1407
        %v1409 = vrot.slane %v1407, 4
        %v1411 = vshrl.u32 %v1353, 16
        %v1413 = vrot.slane %v1411, 5
        %v1414 = vshll.u32 %v1353, 16
        %v1416 = vrot.slane %v1414, 6
        %v1417 = vor.u32 %v1413, %v1416
        %v1418 = vsel %vm1362, %v1409, %v1417
        %v1420 = vshrl.u32 %v1047, 16
        %v1422 = vrot.slane %v1420, 5
        %v1423 = vshll.u32 %v1047, 16
        %v1425 = vrot.slane %v1423, 6
        %v1426 = vor.u32 %v1422, %v1425
        %v1427 = vrot.slane %v1426, 4
        %v1428 = vrot.slane %v671, 5
        %v1429 = vrot.slane %v667, 6
        %v1430 = vor.u32 %v1428, %v1429
        %v1431 = vsel %vm1362, %v1427, %v1430
        %v1432 = vrot.slane %v1430, 4
        %v1433 = vrot.slane %v681, 5
        %v1434 = vrot.slane %v677, 6
        %v1435 = vor.u32 %v1433, %v1434
        %v1436 = vsel %vm1362, %v1432, %v1435
        %v1437 = vrot.slane %v1435, 4
        %v1439 = vshrl.u32 %v1354, 16
        %v1441 = vrot.slane %v1439, 5
        %v1442 = vshll.u32 %v1354, 16
        %v1444 = vrot.slane %v1442, 6
        %v1445 = vor.u32 %v1441, %v1444
        %v1446 = vsel %vm1362, %v1437, %v1445
        %v1448 = vshrl.u32 %v1048, 16
        %v1450 = vrot.slane %v1448, 5
        %v1451 = vshll.u32 %v1048, 16
        %v1453 = vrot.slane %v1451, 6
        %v1454 = vor.u32 %v1450, %v1453
        %v1455 = vrot.slane %v1454, 4
        %v1456 = vrot.slane %v705, 5
        %v1457 = vrot.slane %v701, 6
        %v1458 = vor.u32 %v1456, %v1457
        %v1459 = vsel %vm1362, %v1455, %v1458
        %v1460 = vrot.slane %v1458, 4
        %v1461 = vrot.slane %v715, 5
        %v1462 = vrot.slane %v711, 6
        %v1463 = vor.u32 %v1461, %v1462
        %v1464 = vsel %vm1362, %v1460, %v1463
        %v1465 = vrot.slane %v1463, 4
        %v1467 = vshrl.u32 %v1355, 16
        %v1469 = vrot.slane %v1467, 5
        %v1470 = vshll.u32 %v1355, 16
        %v1472 = vrot.slane %v1470, 6
        %v1473 = vor.u32 %v1469, %v1472
        %v1474 = vsel %vm1362, %v1465, %v1473
        %v1476 = vshrl.u32 %v1049, 16
        %v1478 = vrot.slane %v1476, 5
        %v1479 = vshll.u32 %v1049, 16
        %v1481 = vrot.slane %v1479, 6
        %v1482 = vor.u32 %v1478, %v1481
        %v1483 = vrot.slane %v1482, 4
        %v1484 = vrot.slane %v739, 5
        %v1485 = vrot.slane %v735, 6
        %v1486 = vor.u32 %v1484, %v1485
        %v1487 = vsel %vm1362, %v1483, %v1486
        %v1488 = vrot.slane %v1486, 4
        %v1489 = vrot.slane %v749, 5
        %v1490 = vrot.slane %v745, 6
        %v1491 = vor.u32 %v1489, %v1490
        %v1492 = vsel %vm1362, %v1488, %v1491
        %v1493 = vrot.slane %v1491, 4
        %v1495 = vshrl.u32 %v1356, 16
        %v1497 = vrot.slane %v1495, 5
        %v1498 = vshll.u32 %v1356, 16
        %v1500 = vrot.slane %v1498, 6
        %v1501 = vor.u32 %v1497, %v1500
        %v1502 = vsel %vm1362, %v1493, %v1501
        %v1504 = vshrl.u32 %v1050, 16
        %v1506 = vrot.slane %v1504, 5
        %v1507 = vshll.u32 %v1050, 16
        %v1509 = vrot.slane %v1507, 6
        %v1510 = vor.u32 %v1506, %v1509
        %v1511 = vrot.slane %v1510, 4
        %v1512 = vrot.slane %v773, 5
        %v1513 = vrot.slane %v769, 6
        %v1514 = vor.u32 %v1512, %v1513
        %v1515 = vsel %vm1362, %v1511, %v1514
        %v1516 = vrot.slane %v1514, 4
        %v1517 = vrot.slane %v783, 5
        %v1518 = vrot.slane %v779, 6
        %v1519 = vor.u32 %v1517, %v1518
        %v1520 = vsel %vm1362, %v1516, %v1519
        %v1521 = vrot.slane %v1519, 4
        %v1523 = vshrl.u32 %v1357, 16
        %v1525 = vrot.slane %v1523, 5
        %v1526 = vshll.u32 %v1357, 16
        %v1528 = vrot.slane %v1526, 6
        %v1529 = vor.u32 %v1525, %v1528
        %v1530 = vsel %vm1362, %v1521, %v1529
        %v1532 = vshrl.u32 %v1051, 16
        %v1534 = vrot.slane %v1532, 5
        %v1535 = vshll.u32 %v1051, 16
        %v1537 = vrot.slane %v1535, 6
        %v1538 = vor.u32 %v1534, %v1537
        %v1539 = vrot.slane %v1538, 4
        %v1540 = vrot.slane %v807, 5
        %v1541 = vrot.slane %v803, 6
        %v1542 = vor.u32 %v1540, %v1541
        %v1543 = vsel %vm1362, %v1539, %v1542
        %v1544 = vrot.slane %v1542, 4
        %v1545 = vrot.slane %v817, 5
        %v1546 = vrot.slane %v813, 6
        %v1547 = vor.u32 %v1545, %v1546
        %v1548 = vsel %vm1362, %v1544, %v1547
        %v1549 = vrot.slane %v1547, 4
        %v1551 = vshrl.u32 %v1358, 16
        %v1553 = vrot.slane %v1551, 5
        %v1554 = vshll.u32 %v1358, 16
        %v1556 = vrot.slane %v1554, 6
        %v1557 = vor.u32 %v1553, %v1556
        %v1558 = vsel %vm1362, %v1549, %v1557
        %v1560 = vshrl.u32 %v1052, 16
        %v1562 = vrot.slane %v1560, 5
        %v1563 = vshll.u32 %v1052, 16
        %v1565 = vrot.slane %v1563, 6
        %v1566 = vor.u32 %v1562, %v1565
        %v1567 = vrot.slane %v1566, 4
        %v1568 = vrot.slane %v841, 5
        %v1569 = vrot.slane %v837, 6
        %v1570 = vor.u32 %v1568, %v1569
        %v1571 = vsel %vm1362, %v1567, %v1570
        %v1572 = vrot.slane %v1570, 4
        %v1573 = vrot.slane %v851, 5
        %v1574 = vrot.slane %v847, 6
        %v1575 = vor.u32 %v1573, %v1574
        %v1576 = vsel %vm1362, %v1572, %v1575
        %v1577 = vrot.slane %v1575, 4
        %v1579 = vshrl.u32 %v1359, 16
        %v1581 = vrot.slane %v1579, 5
        %v1582 = vshll.u32 %v1359, 16
        %v1584 = vrot.slane %v1582, 6
        %v1585 = vor.u32 %v1581, %v1584
        %v1586 = vsel %vm1362, %v1577, %v1585
        %s1587 = scalar_lea.vmem %s1, 48
        %v1588 = vld [vmem:[%s1587] sm:$0xf]
        %v1589 = vld [vmem:[%s1587 + $0x4] sm:$0xf]
        %v1590 = vld [vmem:[%s1587 + $0x8] sm:$0xf]
        %v1591 = vld [vmem:[%s1587 + $0xc] sm:$0x3]
        %v1592 = vunpack.c.l.b16 %v1375
        %v1593 = vunpack.c.l.b16 %v1380
        %v1594 = vunpack.c.l.b16 %v1390
        %v1595 = vunpack.c.l.b16 %v1403
        %v1596 = vunpack.c.l.b16 %v1408
        %v1597 = vunpack.c.l.b16 %v1418
        %v1598 = vunpack.c.l.b16 %v1431
        %v1599 = vunpack.c.l.b16 %v1436
        %v1600 = vunpack.c.l.b16 %v1446
        %v1601 = vunpack.c.l.b16 %v1459
        %v1602 = vunpack.c.l.b16 %v1464
        %v1603 = vunpack.c.l.b16 %v1474
        %v1604 = vunpack.c.l.b16 %v1487
        %v1605 = vunpack.c.l.b16 %v1492
        %v1606 = vunpack.c.l.b16 %v1502
        %v1607 = vunpack.c.l.b16 %v1515
        %v1608 = vunpack.c.l.b16 %v1520
        %v1609 = vunpack.c.l.b16 %v1530
        %v1610 = vunpack.c.l.b16 %v1543
        %v1611 = vunpack.c.l.b16 %v1548
        %v1612 = vunpack.c.l.b16 %v1558
        %v1613 = vunpack.c.l.b16 %v1571
        %v1614 = vunpack.c.l.b16 %v1576
        %v1615 = vunpack.c.l.b16 %v1586
        %v1616 = vpack.c.b16 %v1593, %v1592
        %v1617 = vpack.c.b16 %v1595, %v1594
        %v1618 = vpack.c.b16 %v1597, %v1596
        %v1619 = vpack.c.b16 %v1599, %v1598
        %v1620 = vpack.c.b16 %v1601, %v1600
        %v1621 = vpack.c.b16 %v1603, %v1602
        %v1622 = vpack.c.b16 %v1605, %v1604
        %v1623 = vpack.c.b16 %v1607, %v1606
        %v1624 = vpack.c.b16 %v1609, %v1608
        %v1625 = vpack.c.b16 %v1611, %v1610
        %v1626 = vpack.c.b16 %v1613, %v1612
        %v1627 = vpack.c.b16 %v1615, %v1614
        %v1632 = vunpack.c.l.b16 %v1588
        %v1633 = vunpack.c.l.b16 %v1589
        %v1634 = vunpack.c.l.b16 %v1590
        %v1635 = vunpack.c.l.b16 %v1591
        %v1636 = vpack.c.b16 %v1633, %v1632
        %v1637 = vpack.c.b16 %v1635, %v1634
        %v1640 = vsel %vm420, %v1616, 0
        %v1643 = vsel %vm420, %v1617, 0
        %v1646 = vsel %vm420, %v1618, 0
        %v1649 = vsel %vm420, %v1619, 0
        %v1652 = vsel %vm420, %v1620, 0
        %v1655 = vsel %vm420, %v1621, 0
        %v1658 = vsel %vm420, %v1622, 0
        %v1661 = vsel %vm420, %v1623, 0
        %v1664 = vsel %vm420, %v1624, 0
        %v1667 = vsel %vm420, %v1625, 0
        %v1670 = vsel %vm420, %v1626, 0
        %v1673 = vsel %vm420, %v1627, 0
        %v1676 = vsel %vm457, %v1637, 0
        %1678 = vmatpush.bf16.msra.mxu0 0
        %1679 = vmatpush.bf16.msra.mxu0 0
        %1680 = vmatpush.bf16.msra.mxu0 0
        %1681 = vmatpush.bf16.msra.mxu0 0
        %1682 = vmatpush.bf16.msra.mxu0 0
        %1683 = vmatpush.bf16.msra.mxu0 0
        %1684 = vmatpush.bf16.msra.mxu0 %v1676
        %1685 = vmatpush.bf16.msra.mxu0 %v1636
        %1686 = vmatmul.bf16.gmra.mxu0 %v1640
        %v1687 = vpop.f32.mrf.mxu0
        %v1688 = vadd.f32 0.0, %v1687
        %v1689 = vpop.f32.mrf.mxu0
        %v1690 = vadd.f32 0.0, %v1689
        %1691 = vmatmul.bf16.gmra.mxu0 %v1643
        %v1692 = vpop.f32.mrf.mxu0
        %v1693 = vadd.f32 0.0, %v1692
        %v1694 = vpop.f32.mrf.mxu0
        %v1695 = vadd.f32 0.0, %v1694
        %1696 = vmatmul.bf16.gmra.mxu0 %v1646
        %v1697 = vpop.f32.mrf.mxu0
        %v1698 = vadd.f32 0.0, %v1697
        %v1699 = vpop.f32.mrf.mxu0
        %v1700 = vadd.f32 0.0, %v1699
        %1701 = vmatmul.bf16.gmra.mxu0 %v1649
        %v1702 = vpop.f32.mrf.mxu0
        %v1703 = vadd.f32 0.0, %v1702
        %v1704 = vpop.f32.mrf.mxu0
        %v1705 = vadd.f32 0.0, %v1704
        %1706 = vmatmul.bf16.gmra.mxu0 %v1652
        %v1707 = vpop.f32.mrf.mxu0
        %v1708 = vadd.f32 0.0, %v1707
        %v1709 = vpop.f32.mrf.mxu0
        %v1710 = vadd.f32 0.0, %v1709
        %1711 = vmatmul.bf16.gmra.mxu0 %v1655
        %v1712 = vpop.f32.mrf.mxu0
        %v1713 = vadd.f32 0.0, %v1712
        %v1714 = vpop.f32.mrf.mxu0
        %v1715 = vadd.f32 0.0, %v1714
        %1716 = vmatmul.bf16.gmra.mxu0 %v1658
        %v1717 = vpop.f32.mrf.mxu0
        %v1718 = vadd.f32 0.0, %v1717
        %v1719 = vpop.f32.mrf.mxu0
        %v1720 = vadd.f32 0.0, %v1719
        %1721 = vmatmul.bf16.gmra.mxu0 %v1661
        %v1722 = vpop.f32.mrf.mxu0
        %v1723 = vadd.f32 0.0, %v1722
        %v1724 = vpop.f32.mrf.mxu0
        %v1725 = vadd.f32 0.0, %v1724
        %1726 = vmatmul.bf16.gmra.mxu0 %v1664
        %v1727 = vpop.f32.mrf.mxu0
        %v1728 = vadd.f32 0.0, %v1727
        %v1729 = vpop.f32.mrf.mxu0
        %v1730 = vadd.f32 0.0, %v1729
        %1731 = vmatmul.bf16.gmra.mxu0 %v1667
        %v1732 = vpop.f32.mrf.mxu0
        %v1733 = vadd.f32 0.0, %v1732
        %v1734 = vpop.f32.mrf.mxu0
        %v1735 = vadd.f32 0.0, %v1734
        %1736 = vmatmul.bf16.gmra.mxu0 %v1670
        %v1737 = vpop.f32.mrf.mxu0
        %v1738 = vadd.f32 0.0, %v1737
        %v1739 = vpop.f32.mrf.mxu0
        %v1740 = vadd.f32 0.0, %v1739
        %1741 = vmatmul.bf16.gmra.mxu0 %v1673
        %v1742 = vpop.f32.mrf.mxu0
        %v1743 = vadd.f32 0.0, %v1742
        %v1744 = vpop.f32.mrf.mxu0
        %v1745 = vadd.f32 0.0, %v1744
        %1746 = vdwg.mxu0
        %v1747 = vadd.f32 %v1328, %v1688
        %v1748 = vadd.f32 %v1329, %v1690
        %v1749 = vadd.f32 %v1330, %v1693
        %v1750 = vadd.f32 %v1331, %v1695
        %v1751 = vadd.f32 %v1332, %v1698
        %v1752 = vadd.f32 %v1333, %v1700
        %v1753 = vadd.f32 %v1334, %v1703
        %v1754 = vadd.f32 %v1335, %v1705
        %v1755 = vadd.f32 %v1336, %v1708
        %v1756 = vadd.f32 %v1337, %v1710
        %v1757 = vadd.f32 %v1338, %v1713
        %v1758 = vadd.f32 %v1339, %v1715
        %v1759 = vadd.f32 %v1340, %v1718
        %v1760 = vadd.f32 %v1341, %v1720
        %v1761 = vadd.f32 %v1342, %v1723
        %v1762 = vadd.f32 %v1343, %v1725
        %v1763 = vadd.f32 %v1344, %v1728
        %v1764 = vadd.f32 %v1345, %v1730
        %v1765 = vadd.f32 %v1346, %v1733
        %v1766 = vadd.f32 %v1347, %v1735
        %v1767 = vadd.f32 %v1348, %v1738
        %v1768 = vadd.f32 %v1349, %v1740
        %v1769 = vadd.f32 %v1350, %v1743
        %v1770 = vadd.f32 %v1351, %v1745
        %v1771 = vld [vmem:[%s314] sm:$0xc]
        %v1772 = vld [vmem:[%s314 + $0x10] sm:$0xc]
        %v1773 = vld [vmem:[%s314 + $0x20] sm:$0xc]
        %v1774 = vld [vmem:[%s314 + $0x30] sm:$0xc]
        %v1775 = vld [vmem:[%s314 + $0x40] sm:$0xc]
        %v1776 = vld [vmem:[%s314 + $0x50] sm:$0xc]
        %v1777 = vld [vmem:[%s314 + $0x60] sm:$0xc]
        %v1778 = vld [vmem:[%s314 + $0x70] sm:$0xc]
        %vm1795 = vcmask 1041408
        %vm1796 = vcmask 1045508
        %vm1797 = vmor %vm1795, %vm1796
        %v1798 = vrot.slane %v1771, 6
        %v1799 = vrot.slane %v1798, 4
        %v1800 = vrot.slane %v555, 6
        %v1801 = vsel %vm1797, %v1799, %v1800
        %v1802 = vrot.slane %v1800, 4
        %v1803 = vrot.slane %v556, 6
        %v1804 = vsel %vm1797, %v1802, %v1803
        %v1805 = vrot.slane %v1803, 4
        %v1806 = vrot.slane %v1352, 6
        %v1807 = vsel %vm1797, %v1805, %v1806
        %v1808 = vrot.slane %v1772, 6
        %v1809 = vrot.slane %v1808, 4
        %v1810 = vrot.slane %v559, 6
        %v1811 = vsel %vm1797, %v1809, %v1810
        %v1812 = vrot.slane %v1810, 4
        %v1813 = vrot.slane %v560, 6
        %v1814 = vsel %vm1797, %v1812, %v1813
        %v1815 = vrot.slane %v1813, 4
        %v1816 = vrot.slane %v1353, 6
        %v1817 = vsel %vm1797, %v1815, %v1816
        %v1818 = vrot.slane %v1773, 6
        %v1819 = vrot.slane %v1818, 4
        %v1820 = vrot.slane %v563, 6
        %v1821 = vsel %vm1797, %v1819, %v1820
        %v1822 = vrot.slane %v1820, 4
        %v1823 = vrot.slane %v564, 6
        %v1824 = vsel %vm1797, %v1822, %v1823
        %v1825 = vrot.slane %v1823, 4
        %v1826 = vrot.slane %v1354, 6
        %v1827 = vsel %vm1797, %v1825, %v1826
        %v1828 = vrot.slane %v1774, 6
        %v1829 = vrot.slane %v1828, 4
        %v1830 = vrot.slane %v567, 6
        %v1831 = vsel %vm1797, %v1829, %v1830
        %v1832 = vrot.slane %v1830, 4
        %v1833 = vrot.slane %v568, 6
        %v1834 = vsel %vm1797, %v1832, %v1833
        %v1835 = vrot.slane %v1833, 4
        %v1836 = vrot.slane %v1355, 6
        %v1837 = vsel %vm1797, %v1835, %v1836
        %v1838 = vrot.slane %v1775, 6
        %v1839 = vrot.slane %v1838, 4
        %v1840 = vrot.slane %v571, 6
        %v1841 = vsel %vm1797, %v1839, %v1840
        %v1842 = vrot.slane %v1840, 4
        %v1843 = vrot.slane %v572, 6
        %v1844 = vsel %vm1797, %v1842, %v1843
        %v1845 = vrot.slane %v1843, 4
        %v1846 = vrot.slane %v1356, 6
        %v1847 = vsel %vm1797, %v1845, %v1846
        %v1848 = vrot.slane %v1776, 6
        %v1849 = vrot.slane %v1848, 4
        %v1850 = vrot.slane %v575, 6
        %v1851 = vsel %vm1797, %v1849, %v1850
        %v1852 = vrot.slane %v1850, 4
        %v1853 = vrot.slane %v576, 6
        %v1854 = vsel %vm1797, %v1852, %v1853
        %v1855 = vrot.slane %v1853, 4
        %v1856 = vrot.slane %v1357, 6
        %v1857 = vsel %vm1797, %v1855, %v1856
        %v1858 = vrot.slane %v1777, 6
        %v1859 = vrot.slane %v1858, 4
        %v1860 = vrot.slane %v579, 6
        %v1861 = vsel %vm1797, %v1859, %v1860
        %v1862 = vrot.slane %v1860, 4
        %v1863 = vrot.slane %v580, 6
        %v1864 = vsel %vm1797, %v1862, %v1863
        %v1865 = vrot.slane %v1863, 4
        %v1866 = vrot.slane %v1358, 6
        %v1867 = vsel %vm1797, %v1865, %v1866
        %v1868 = vrot.slane %v1778, 6
        %v1869 = vrot.slane %v1868, 4
        %v1870 = vrot.slane %v583, 6
        %v1871 = vsel %vm1797, %v1869, %v1870
        %v1872 = vrot.slane %v1870, 4
        %v1873 = vrot.slane %v584, 6
        %v1874 = vsel %vm1797, %v1872, %v1873
        %v1875 = vrot.slane %v1873, 4
        %v1876 = vrot.slane %v1359, 6
        %v1877 = vsel %vm1797, %v1875, %v1876
        %s1878 = scalar_lea.vmem %s1, 64
        %v1879 = vld [vmem:[%s1878] sm:$0xf]
        %v1880 = vld [vmem:[%s1878 + $0x4] sm:$0xf]
        %v1881 = vld [vmem:[%s1878 + $0x8] sm:$0xf]
        %v1882 = vld [vmem:[%s1878 + $0xc] sm:$0x3]
        %v1883 = vunpack.c.l.b16 %v1801
        %v1884 = vunpack.c.l.b16 %v1804
        %v1885 = vunpack.c.l.b16 %v1807
        %v1886 = vunpack.c.l.b16 %v1811
        %v1887 = vunpack.c.l.b16 %v1814
        %v1888 = vunpack.c.l.b16 %v1817
        %v1889 = vunpack.c.l.b16 %v1821
        %v1890 = vunpack.c.l.b16 %v1824
        %v1891 = vunpack.c.l.b16 %v1827
        %v1892 = vunpack.c.l.b16 %v1831
        %v1893 = vunpack.c.l.b16 %v1834
        %v1894 = vunpack.c.l.b16 %v1837
        %v1895 = vunpack.c.l.b16 %v1841
        %v1896 = vunpack.c.l.b16 %v1844
        %v1897 = vunpack.c.l.b16 %v1847
        %v1898 = vunpack.c.l.b16 %v1851
        %v1899 = vunpack.c.l.b16 %v1854
        %v1900 = vunpack.c.l.b16 %v1857
        %v1901 = vunpack.c.l.b16 %v1861
        %v1902 = vunpack.c.l.b16 %v1864
        %v1903 = vunpack.c.l.b16 %v1867
        %v1904 = vunpack.c.l.b16 %v1871
        %v1905 = vunpack.c.l.b16 %v1874
        %v1906 = vunpack.c.l.b16 %v1877
        %v1907 = vpack.c.b16 %v1884, %v1883
        %v1908 = vpack.c.b16 %v1886, %v1885
        %v1909 = vpack.c.b16 %v1888, %v1887
        %v1910 = vpack.c.b16 %v1890, %v1889
        %v1911 = vpack.c.b16 %v1892, %v1891
        %v1912 = vpack.c.b16 %v1894, %v1893
        %v1913 = vpack.c.b16 %v1896, %v1895
        %v1914 = vpack.c.b16 %v1898, %v1897
        %v1915 = vpack.c.b16 %v1900, %v1899
        %v1916 = vpack.c.b16 %v1902, %v1901
        %v1917 = vpack.c.b16 %v1904, %v1903
        %v1918 = vpack.c.b16 %v1906, %v1905
        %v1923 = vunpack.c.l.b16 %v1879
        %v1924 = vunpack.c.l.b16 %v1880
        %v1925 = vunpack.c.l.b16 %v1881
        %v1926 = vunpack.c.l.b16 %v1882
        %v1927 = vpack.c.b16 %v1924, %v1923
        %v1928 = vpack.c.b16 %v1926, %v1925
        %v1931 = vsel %vm420, %v1907, 0
        %v1934 = vsel %vm420, %v1908, 0
        %v1937 = vsel %vm420, %v1909, 0
        %v1940 = vsel %vm420, %v1910, 0
        %v1943 = vsel %vm420, %v1911, 0
        %v1946 = vsel %vm420, %v1912, 0
        %v1949 = vsel %vm420, %v1913, 0
        %v1952 = vsel %vm420, %v1914, 0
        %v1955 = vsel %vm420, %v1915, 0
        %v1958 = vsel %vm420, %v1916, 0
        %v1961 = vsel %vm420, %v1917, 0
        %v1964 = vsel %vm420, %v1918, 0
        %v1967 = vsel %vm457, %v1928, 0
        %1969 = vmatpush.bf16.msra.mxu0 0
        %1970 = vmatpush.bf16.msra.mxu0 0
        %1971 = vmatpush.bf16.msra.mxu0 0
        %1972 = vmatpush.bf16.msra.mxu0 0
        %1973 = vmatpush.bf16.msra.mxu0 0
        %1974 = vmatpush.bf16.msra.mxu0 0
        %1975 = vmatpush.bf16.msra.mxu0 %v1967
        %1976 = vmatpush.bf16.msra.mxu0 %v1927
        %1977 = vmatmul.bf16.gmra.mxu0 %v1931
        %v1978 = vpop.f32.mrf.mxu0
        %v1979 = vadd.f32 0.0, %v1978
        %v1980 = vpop.f32.mrf.mxu0
        %v1981 = vadd.f32 0.0, %v1980
        %1982 = vmatmul.bf16.gmra.mxu0 %v1934
        %v1983 = vpop.f32.mrf.mxu0
        %v1984 = vadd.f32 0.0, %v1983
        %v1985 = vpop.f32.mrf.mxu0
        %v1986 = vadd.f32 0.0, %v1985
        %1987 = vmatmul.bf16.gmra.mxu0 %v1937
        %v1988 = vpop.f32.mrf.mxu0
        %v1989 = vadd.f32 0.0, %v1988
        %v1990 = vpop.f32.mrf.mxu0
        %v1991 = vadd.f32 0.0, %v1990
        %1992 = vmatmul.bf16.gmra.mxu0 %v1940
        %v1993 = vpop.f32.mrf.mxu0
        %v1994 = vadd.f32 0.0, %v1993
        %v1995 = vpop.f32.mrf.mxu0
        %v1996 = vadd.f32 0.0, %v1995
        %1997 = vmatmul.bf16.gmra.mxu0 %v1943
        %v1998 = vpop.f32.mrf.mxu0
        %v1999 = vadd.f32 0.0, %v1998
        %v2000 = vpop.f32.mrf.mxu0
        %v2001 = vadd.f32 0.0, %v2000
        %2002 = vmatmul.bf16.gmra.mxu0 %v1946
        %v2003 = vpop.f32.mrf.mxu0
        %v2004 = vadd.f32 0.0, %v2003
        %v2005 = vpop.f32.mrf.mxu0
        %v2006 = vadd.f32 0.0, %v2005
        %2007 = vmatmul.bf16.gmra.mxu0 %v1949
        %v2008 = vpop.f32.mrf.mxu0
        %v2009 = vadd.f32 0.0, %v2008
        %v2010 = vpop.f32.mrf.mxu0
        %v2011 = vadd.f32 0.0, %v2010
        %2012 = vmatmul.bf16.gmra.mxu0 %v1952
        %v2013 = vpop.f32.mrf.mxu0
        %v2014 = vadd.f32 0.0, %v2013
        %v2015 = vpop.f32.mrf.mxu0
        %v2016 = vadd.f32 0.0, %v2015
        %2017 = vmatmul.bf16.gmra.mxu0 %v1955
        %v2018 = vpop.f32.mrf.mxu0
        %v2019 = vadd.f32 0.0, %v2018
        %v2020 = vpop.f32.mrf.mxu0
        %v2021 = vadd.f32 0.0, %v2020
        %2022 = vmatmul.bf16.gmra.mxu0 %v1958
        %v2023 = vpop.f32.mrf.mxu0
        %v2024 = vadd.f32 0.0, %v2023
        %v2025 = vpop.f32.mrf.mxu0
        %v2026 = vadd.f32 0.0, %v2025
        %2027 = vmatmul.bf16.gmra.mxu0 %v1961
        %v2028 = vpop.f32.mrf.mxu0
        %v2029 = vadd.f32 0.0, %v2028
        %v2030 = vpop.f32.mrf.mxu0
        %v2031 = vadd.f32 0.0, %v2030
        %2032 = vmatmul.bf16.gmra.mxu0 %v1964
        %v2033 = vpop.f32.mrf.mxu0
        %v2034 = vadd.f32 0.0, %v2033
        %v2035 = vpop.f32.mrf.mxu0
        %v2036 = vadd.f32 0.0, %v2035
        %2037 = vdwg.mxu0
        %v2038 = vadd.f32 %v1747, %v1979
        %v2039 = vadd.f32 %v1748, %v1981
        %v2040 = vadd.f32 %v1749, %v1984
        %v2041 = vadd.f32 %v1750, %v1986
        %v2042 = vadd.f32 %v1751, %v1989
        %v2043 = vadd.f32 %v1752, %v1991
        %v2044 = vadd.f32 %v1753, %v1994
        %v2045 = vadd.f32 %v1754, %v1996
        %v2046 = vadd.f32 %v1755, %v1999
        %v2047 = vadd.f32 %v1756, %v2001
        %v2048 = vadd.f32 %v1757, %v2004
        %v2049 = vadd.f32 %v1758, %v2006
        %v2050 = vadd.f32 %v1759, %v2009
        %v2051 = vadd.f32 %v1760, %v2011
        %v2052 = vadd.f32 %v1761, %v2014
        %v2053 = vadd.f32 %v1762, %v2016
        %v2054 = vadd.f32 %v1763, %v2019
        %v2055 = vadd.f32 %v1764, %v2021
        %v2056 = vadd.f32 %v1765, %v2024
        %v2057 = vadd.f32 %v1766, %v2026
        %v2058 = vadd.f32 %v1767, %v2029
        %v2059 = vadd.f32 %v1768, %v2031
        %v2060 = vadd.f32 %v1769, %v2034
        %v2061 = vadd.f32 %v1770, %v2036
        %2062 = vrot.lane.b32.xlu0 %v2038, 127
        %v2063 = vpop.permute.xlu0 %2062
        %2064 = vrot.lane.b32.xlu0 %v2039, 127
        %v2065 = vpop.permute.xlu0 %2064
        %2066 = vrot.lane.b32.xlu0 %v2040, 127
        %v2067 = vpop.permute.xlu0 %2066
        %2068 = vrot.lane.b32.xlu0 %v2041, 127
        %v2069 = vpop.permute.xlu0 %2068
        %2070 = vrot.lane.b32.xlu0 %v2042, 127
        %v2071 = vpop.permute.xlu0 %2070
        %2072 = vrot.lane.b32.xlu0 %v2043, 127
        %v2073 = vpop.permute.xlu0 %2072
        %2074 = vrot.lane.b32.xlu0 %v2044, 127
        %v2075 = vpop.permute.xlu0 %2074
        %2076 = vrot.lane.b32.xlu0 %v2045, 127
        %v2077 = vpop.permute.xlu0 %2076
        %2078 = vrot.lane.b32.xlu0 %v2046, 127
        %v2079 = vpop.permute.xlu0 %2078
        %2080 = vrot.lane.b32.xlu0 %v2047, 127
        %v2081 = vpop.permute.xlu0 %2080
        %2082 = vrot.lane.b32.xlu0 %v2048, 127
        %v2083 = vpop.permute.xlu0 %2082
        %2084 = vrot.lane.b32.xlu0 %v2049, 127
        %v2085 = vpop.permute.xlu0 %2084
        %2086 = vrot.lane.b32.xlu0 %v2050, 127
        %v2087 = vpop.permute.xlu0 %2086
        %2088 = vrot.lane.b32.xlu0 %v2051, 127
        %v2089 = vpop.permute.xlu0 %2088
        %2090 = vrot.lane.b32.xlu0 %v2052, 127
        %v2091 = vpop.permute.xlu0 %2090
        %2092 = vrot.lane.b32.xlu0 %v2053, 127
        %v2093 = vpop.permute.xlu0 %2092
        %2094 = vrot.lane.b32.xlu0 %v2054, 127
        %v2095 = vpop.permute.xlu0 %2094
        %2096 = vrot.lane.b32.xlu0 %v2055, 127
        %v2097 = vpop.permute.xlu0 %2096
        %2098 = vrot.lane.b32.xlu0 %v2056, 127
        %v2099 = vpop.permute.xlu0 %2098
        %2100 = vrot.lane.b32.xlu0 %v2057, 127
        %v2101 = vpop.permute.xlu0 %2100
        %2102 = vrot.lane.b32.xlu0 %v2058, 127
        %v2103 = vpop.permute.xlu0 %2102
        %2104 = vrot.lane.b32.xlu0 %v2059, 127
        %v2105 = vpop.permute.xlu0 %2104
        %2106 = vrot.lane.b32.xlu0 %v2060, 127
        %v2107 = vpop.permute.xlu0 %2106
        %2108 = vrot.lane.b32.xlu0 %v2061, 127
        %v2109 = vpop.permute.xlu0 %2108
        %v2110 = vmax.f32 %v2038, %v2063
        %v2111 = vmax.f32 %v2039, %v2065
        %v2112 = vmax.f32 %v2040, %v2067
        %v2113 = vmax.f32 %v2041, %v2069
        %v2114 = vmax.f32 %v2042, %v2071
        %v2115 = vmax.f32 %v2043, %v2073
        %v2116 = vmax.f32 %v2044, %v2075
        %v2117 = vmax.f32 %v2045, %v2077
        %v2118 = vmax.f32 %v2046, %v2079
        %v2119 = vmax.f32 %v2047, %v2081
        %v2120 = vmax.f32 %v2048, %v2083
        %v2121 = vmax.f32 %v2049, %v2085
        %v2122 = vmax.f32 %v2050, %v2087
        %v2123 = vmax.f32 %v2051, %v2089
        %v2124 = vmax.f32 %v2052, %v2091
        %v2125 = vmax.f32 %v2053, %v2093
        %v2126 = vmax.f32 %v2054, %v2095
        %v2127 = vmax.f32 %v2055, %v2097
        %v2128 = vmax.f32 %v2056, %v2099
        %v2129 = vmax.f32 %v2057, %v2101
        %v2130 = vmax.f32 %v2058, %v2103
        %v2131 = vmax.f32 %v2059, %v2105
        %v2132 = vmax.f32 %v2060, %v2107
        %v2133 = vmax.f32 %v2061, %v2109
        %2134 = vst [vmem:[#allocation2] sm:$0xff] %v2110
        %2135 = vst [vmem:[#allocation2 + $0x8] sm:$0xff] %v2111
        %2136 = vst [vmem:[#allocation2 + $0x10] sm:$0xff] %v2112
        %2137 = vst [vmem:[#allocation2 + $0x18] sm:$0xff] %v2113
        %2138 = vst [vmem:[#allocation2 + $0x20] sm:$0xff] %v2114
        %2139 = vst [vmem:[#allocation2 + $0x28] sm:$0xff] %v2115
        %2140 = vst [vmem:[#allocation2 + $0x30] sm:$0xff] %v2116
        %2141 = vst [vmem:[#allocation2 + $0x38] sm:$0xff] %v2117
        %2142 = vst [vmem:[#allocation2 + $0x40] sm:$0xff] %v2118
        %2143 = vst [vmem:[#allocation2 + $0x48] sm:$0xff] %v2119
        %2144 = vst [vmem:[#allocation2 + $0x50] sm:$0xff] %v2120
        %2145 = vst [vmem:[#allocation2 + $0x58] sm:$0xff] %v2121
        %2146 = vst [vmem:[#allocation2 + $0x60] sm:$0xff] %v2122
        %2147 = vst [vmem:[#allocation2 + $0x68] sm:$0xff] %v2123
        %2148 = vst [vmem:[#allocation2 + $0x70] sm:$0xff] %v2124
        %2149 = vst [vmem:[#allocation2 + $0x78] sm:$0xff] %v2125
        %2150 = vst [vmem:[#allocation2 + $0x80] sm:$0xff] %v2126
        %2151 = vst [vmem:[#allocation2 + $0x88] sm:$0xff] %v2127
        %2152 = vst [vmem:[#allocation2 + $0x90] sm:$0xff] %v2128
        %2153 = vst [vmem:[#allocation2 + $0x98] sm:$0xff] %v2129
        %2154 = vst [vmem:[#allocation2 + $0xa0] sm:$0xff] %v2130
        %2155 = vst [vmem:[#allocation2 + $0xa8] sm:$0xff] %v2131
        %2156 = vst [vmem:[#allocation2 + $0xb0] sm:$0xff] %v2132
        %2157 = vst [vmem:[#allocation2 + $0xb8] sm:$0xff] %v2133
        %v2158 = vld [vmem:[#allocation2] ss:$2 sm:$0xff]
        %s2159 = scalar_lea.vmem [#allocation2], 16
        %v2160 = vld [vmem:[%s2159] ss:$2 sm:$0xf]
        %s2161 = scalar_lea.vmem [#allocation2], 24
        %v2162 = vld [vmem:[%s2161] ss:$2 sm:$0xff]
        %s2163 = scalar_lea.vmem [#allocation2], 40
        %v2164 = vld [vmem:[%s2163] ss:$2 sm:$0xf]
        %s2165 = scalar_lea.vmem [#allocation2], 48
        %v2166 = vld [vmem:[%s2165] ss:$2 sm:$0xff]
        %s2167 = scalar_lea.vmem [#allocation2], 64
        %v2168 = vld [vmem:[%s2167] ss:$2 sm:$0xf]
        %s2169 = scalar_lea.vmem [#allocation2], 72
        %v2170 = vld [vmem:[%s2169] ss:$2 sm:$0xff]
        %s2171 = scalar_lea.vmem [#allocation2], 88
        %v2172 = vld [vmem:[%s2171] ss:$2 sm:$0xf]
        %s2173 = scalar_lea.vmem [#allocation2], 96
        %v2174 = vld [vmem:[%s2173] ss:$2 sm:$0xff]
        %s2175 = scalar_lea.vmem [#allocation2], 112
        %v2176 = vld [vmem:[%s2175] ss:$2 sm:$0xf]
        %s2177 = scalar_lea.vmem [#allocation2], 120
        %v2178 = vld [vmem:[%s2177] ss:$2 sm:$0xff]
        %s2179 = scalar_lea.vmem [#allocation2], 136
        %v2180 = vld [vmem:[%s2179] ss:$2 sm:$0xf]
        %s2181 = scalar_lea.vmem [#allocation2], 144
        %v2182 = vld [vmem:[%s2181] ss:$2 sm:$0xff]
        %s2183 = scalar_lea.vmem [#allocation2], 160
        %v2184 = vld [vmem:[%s2183] ss:$2 sm:$0xf]
        %s2185 = scalar_lea.vmem [#allocation2], 168
        %v2186 = vld [vmem:[%s2185] ss:$2 sm:$0xff]
        %s2187 = scalar_lea.vmem [#allocation2], 184
        %v2188 = vld [vmem:[%s2187] ss:$2 sm:$0xf]
        %s2189 = scalar_lea.vmem [#allocation2], 1
        %v2190 = vld [vmem:[%s2189] ss:$2 sm:$0xff]
        %s2191 = scalar_lea.vmem [#allocation2], 17
        %v2192 = vld [vmem:[%s2191] ss:$2 sm:$0xf]
        %s2193 = scalar_lea.vmem [#allocation2], 25
        %v2194 = vld [vmem:[%s2193] ss:$2 sm:$0xff]
        %s2195 = scalar_lea.vmem [#allocation2], 41
        %v2196 = vld [vmem:[%s2195] ss:$2 sm:$0xf]
        %s2197 = scalar_lea.vmem [#allocation2], 49
        %v2198 = vld [vmem:[%s2197] ss:$2 sm:$0xff]
        %s2199 = scalar_lea.vmem [#allocation2], 65
        %v2200 = vld [vmem:[%s2199] ss:$2 sm:$0xf]
        %s2201 = scalar_lea.vmem [#allocation2], 73
        %v2202 = vld [vmem:[%s2201] ss:$2 sm:$0xff]
        %s2203 = scalar_lea.vmem [#allocation2], 89
        %v2204 = vld [vmem:[%s2203] ss:$2 sm:$0xf]
        %s2205 = scalar_lea.vmem [#allocation2], 97
        %v2206 = vld [vmem:[%s2205] ss:$2 sm:$0xff]
        %s2207 = scalar_lea.vmem [#allocation2], 113
        %v2208 = vld [vmem:[%s2207] ss:$2 sm:$0xf]
        %s2209 = scalar_lea.vmem [#allocation2], 121
        %v2210 = vld [vmem:[%s2209] ss:$2 sm:$0xff]
        %s2211 = scalar_lea.vmem [#allocation2], 137
        %v2212 = vld [vmem:[%s2211] ss:$2 sm:$0xf]
        %s2213 = scalar_lea.vmem [#allocation2], 145
        %v2214 = vld [vmem:[%s2213] ss:$2 sm:$0xff]
        %s2215 = scalar_lea.vmem [#allocation2], 161
        %v2216 = vld [vmem:[%s2215] ss:$2 sm:$0xf]
        %s2217 = scalar_lea.vmem [#allocation2], 169
        %v2218 = vld [vmem:[%s2217] ss:$2 sm:$0xff]
        %s2219 = scalar_lea.vmem [#allocation2], 185
        %v2220 = vld [vmem:[%s2219] ss:$2 sm:$0xf]
        %v2221 = vmax.f32 %v2158, %v2190
        %v2222 = vmax.f32 %v2160, %v2192
        %v2223 = vmax.f32 %v2162, %v2194
        %v2224 = vmax.f32 %v2164, %v2196
        %v2225 = vmax.f32 %v2166, %v2198
        %v2226 = vmax.f32 %v2168, %v2200
        %v2227 = vmax.f32 %v2170, %v2202
        %v2228 = vmax.f32 %v2172, %v2204
        %v2229 = vmax.f32 %v2174, %v2206
        %v2230 = vmax.f32 %v2176, %v2208
        %v2231 = vmax.f32 %v2178, %v2210
        %v2232 = vmax.f32 %v2180, %v2212
        %v2233 = vmax.f32 %v2182, %v2214
        %v2234 = vmax.f32 %v2184, %v2216
        %v2235 = vmax.f32 %v2186, %v2218
        %v2236 = vmax.f32 %v2188, %v2220
        %v2237 = vmax.f32 %v2221, 0.0
        %v2238 = vmax.f32 %v2222, 0.0
        %v2239 = vmax.f32 %v2223, 0.0
        %v2240 = vmax.f32 %v2224, 0.0
        %v2241 = vmax.f32 %v2225, 0.0
        %v2242 = vmax.f32 %v2226, 0.0
        %v2243 = vmax.f32 %v2227, 0.0
        %v2244 = vmax.f32 %v2228, 0.0
        %v2245 = vmax.f32 %v2229, 0.0
        %v2246 = vmax.f32 %v2230, 0.0
        %v2247 = vmax.f32 %v2231, 0.0
        %v2248 = vmax.f32 %v2232, 0.0
        %v2249 = vmax.f32 %v2233, 0.0
        %v2250 = vmax.f32 %v2234, 0.0
        %v2251 = vmax.f32 %v2235, 0.0
        %v2252 = vmax.f32 %v2236, 0.0
        %2253 = vst [vmem:[#allocation3] sm:$0xff] %v2237
        %2254 = vst [vmem:[#allocation3 + $0x8] sm:$0xf] %v2238
        %2255 = vst [vmem:[#allocation3 + $0x10] sm:$0xff] %v2239
        %2256 = vst [vmem:[#allocation3 + $0x18] sm:$0xf] %v2240
        %2257 = vst [vmem:[#allocation3 + $0x20] sm:$0xff] %v2241
        %2258 = vst [vmem:[#allocation3 + $0x28] sm:$0xf] %v2242
        %2259 = vst [vmem:[#allocation3 + $0x30] sm:$0xff] %v2243
        %2260 = vst [vmem:[#allocation3 + $0x38] sm:$0xf] %v2244
        %2261 = vst [vmem:[#allocation3 + $0x40] sm:$0xff] %v2245
        %2262 = vst [vmem:[#allocation3 + $0x48] sm:$0xf] %v2246
        %2263 = vst [vmem:[#allocation3 + $0x50] sm:$0xff] %v2247
        %2264 = vst [vmem:[#allocation3 + $0x58] sm:$0xf] %v2248
        %2265 = vst [vmem:[#allocation3 + $0x60] sm:$0xff] %v2249
        %2266 = vst [vmem:[#allocation3 + $0x68] sm:$0xf] %v2250
        %2267 = vst [vmem:[#allocation3 + $0x70] sm:$0xff] %v2251
        %2268 = vst [vmem:[#allocation3 + $0x78] sm:$0xf] %v2252
        %v2269 = vld [vmem:[%s4] sm:$0x1]
        %v2271 = vperm.slane %v2269, 0
        %v2273 = vld [vmem:[#allocation3] sm:$0xff]
        %v2274 = vld [vmem:[#allocation3 + $0x10] sm:$0xff]
        %v2275 = vld [vmem:[#allocation3 + $0x20] sm:$0xff]
        %v2276 = vld [vmem:[#allocation3 + $0x30] sm:$0xff]
        %v2277 = vld [vmem:[#allocation3 + $0x40] sm:$0xff]
        %v2278 = vld [vmem:[#allocation3 + $0x50] sm:$0xff]
        %v2279 = vld [vmem:[#allocation3 + $0x60] sm:$0xff]
        %v2280 = vld [vmem:[#allocation3 + $0x70] sm:$0xff]
        %v2281 = vld [vmem:[#allocation6] sm:$0xff]
        %v2282 = vld [vmem:[#allocation6 + $0x8] sm:$0xff]
        %v2283 = vld [vmem:[#allocation6 + $0x10] sm:$0xff]
        %v2284 = vld [vmem:[#allocation6 + $0x18] sm:$0xff]
        %v2285 = vld [vmem:[#allocation6 + $0x20] sm:$0xff]
        %v2286 = vld [vmem:[#allocation6 + $0x28] sm:$0xff]
        %v2287 = vld [vmem:[#allocation6 + $0x30] sm:$0xff]
        %v2288 = vld [vmem:[#allocation6 + $0x38] sm:$0xff]
        %v2289 = vld [vmem:[#allocation6 + $0x40] sm:$0xff]
        %v2290 = vld [vmem:[#allocation6 + $0x48] sm:$0xff]
        %v2291 = vld [vmem:[#allocation6 + $0x50] sm:$0xff]
        %v2292 = vld [vmem:[#allocation6 + $0x58] sm:$0xff]
        %v2293 = vld [vmem:[#allocation6 + $0x60] sm:$0xff]
        %v2294 = vld [vmem:[#allocation6 + $0x68] sm:$0xff]
        %v2295 = vld [vmem:[#allocation6 + $0x70] sm:$0xff]
        %v2296 = vld [vmem:[#allocation6 + $0x78] sm:$0xff]
        %2297 = vmatpush.msra.mxu0 %v2296
        %2298 = vmatpush.msra.mxu0 %v2295
        %2299 = vmatpush.msra.mxu0 %v2294
        %2300 = vmatpush.msra.mxu0 %v2293
        %2301 = vmatpush.msra.mxu0 %v2292
        %2302 = vmatpush.msra.mxu0 %v2291
        %2303 = vmatpush.msra.mxu0 %v2290
        %2304 = vmatpush.msra.mxu0 %v2289
        %2305 = vmatpush.msra.mxu0 %v2288
        %2306 = vmatpush.msra.mxu0 %v2287
        %2307 = vmatpush.msra.mxu0 %v2286
        %2308 = vmatpush.msra.mxu0 %v2285
        %2309 = vmatpush.msra.mxu0 %v2284
        %2310 = vmatpush.msra.mxu0 %v2283
        %2311 = vmatpush.msra.mxu0 %v2282
        %2312 = vmatpush.msra.mxu0 %v2281
        %2313 = vmatmul.f32.gmra.mxu0 %v2273
        %v2314 = vpop.f32.mrf.mxu0
        %v2315 = vadd.f32 0.0, %v2314
        %2316 = vmatmul.f32.gmra.mxu0 %v2274
        %v2317 = vpop.f32.mrf.mxu0
        %v2318 = vadd.f32 0.0, %v2317
        %2319 = vmatmul.f32.gmra.mxu0 %v2275
        %v2320 = vpop.f32.mrf.mxu0
        %v2321 = vadd.f32 0.0, %v2320
        %2322 = vmatmul.f32.gmra.mxu0 %v2276
        %v2323 = vpop.f32.mrf.mxu0
        %v2324 = vadd.f32 0.0, %v2323
        %2325 = vmatmul.f32.gmra.mxu0 %v2277
        %v2326 = vpop.f32.mrf.mxu0
        %v2327 = vadd.f32 0.0, %v2326
        %2328 = vmatmul.f32.gmra.mxu0 %v2278
        %v2329 = vpop.f32.mrf.mxu0
        %v2330 = vadd.f32 0.0, %v2329
        %2331 = vmatmul.f32.gmra.mxu0 %v2279
        %v2332 = vpop.f32.mrf.mxu0
        %v2333 = vadd.f32 0.0, %v2332
        %2334 = vmatmul.f32.gmra.mxu0 %v2280
        %v2335 = vpop.f32.mrf.mxu0
        %v2336 = vadd.f32 0.0, %v2335
        %2337 = vdwg.mxu0
        %v2338 = vadd.f32 %v2271, %v2315
        %v2339 = vadd.f32 %v2271, %v2318
        %v2340 = vadd.f32 %v2271, %v2321
        %v2341 = vadd.f32 %v2271, %v2324
        %v2342 = vadd.f32 %v2271, %v2327
        %v2343 = vadd.f32 %v2271, %v2330
        %v2344 = vadd.f32 %v2271, %v2333
        %v2345 = vadd.f32 %v2271, %v2336
        %v2346 = vld [vmem:[#allocation3 + $0x1] sm:$0xff]
        %v2347 = vld [vmem:[#allocation3 + $0x11] sm:$0xff]
        %v2348 = vld [vmem:[#allocation3 + $0x21] sm:$0xff]
        %v2349 = vld [vmem:[#allocation3 + $0x31] sm:$0xff]
        %v2350 = vld [vmem:[#allocation3 + $0x41] sm:$0xff]
        %v2351 = vld [vmem:[#allocation3 + $0x51] sm:$0xff]
        %v2352 = vld [vmem:[#allocation3 + $0x61] sm:$0xff]
        %v2353 = vld [vmem:[#allocation3 + $0x71] sm:$0xff]
        %s2354 = scalar_lea.vmem [#allocation6], 128
        %v2355 = vld [vmem:[%s2354] sm:$0xff]
        %v2356 = vld [vmem:[%s2354 + $0x8] sm:$0xff]
        %v2357 = vld [vmem:[%s2354 + $0x10] sm:$0xff]
        %v2358 = vld [vmem:[%s2354 + $0x18] sm:$0xff]
        %v2359 = vld [vmem:[%s2354 + $0x20] sm:$0xff]
        %v2360 = vld [vmem:[%s2354 + $0x28] sm:$0xff]
        %v2361 = vld [vmem:[%s2354 + $0x30] sm:$0xff]
        %v2362 = vld [vmem:[%s2354 + $0x38] sm:$0xff]
        %v2363 = vld [vmem:[%s2354 + $0x40] sm:$0xff]
        %v2364 = vld [vmem:[%s2354 + $0x48] sm:$0xff]
        %v2365 = vld [vmem:[%s2354 + $0x50] sm:$0xff]
        %v2366 = vld [vmem:[%s2354 + $0x58] sm:$0xff]
        %v2367 = vld [vmem:[%s2354 + $0x60] sm:$0xff]
        %v2368 = vld [vmem:[%s2354 + $0x68] sm:$0xff]
        %v2369 = vld [vmem:[%s2354 + $0x70] sm:$0xff]
        %v2370 = vld [vmem:[%s2354 + $0x78] sm:$0xff]
        %2371 = vmatpush.msra.mxu0 %v2370
        %2372 = vmatpush.msra.mxu0 %v2369
        %2373 = vmatpush.msra.mxu0 %v2368
        %2374 = vmatpush.msra.mxu0 %v2367
        %2375 = vmatpush.msra.mxu0 %v2366
        %2376 = vmatpush.msra.mxu0 %v2365
        %2377 = vmatpush.msra.mxu0 %v2364
        %2378 = vmatpush.msra.mxu0 %v2363
        %2379 = vmatpush.msra.mxu0 %v2362
        %2380 = vmatpush.msra.mxu0 %v2361
        %2381 = vmatpush.msra.mxu0 %v2360
        %2382 = vmatpush.msra.mxu0 %v2359
        %2383 = vmatpush.msra.mxu0 %v2358
        %2384 = vmatpush.msra.mxu0 %v2357
        %2385 = vmatpush.msra.mxu0 %v2356
        %2386 = vmatpush.msra.mxu0 %v2355
        %2387 = vmatmul.f32.gmra.mxu0 %v2346
        %v2388 = vpop.f32.mrf.mxu0
        %v2389 = vadd.f32 0.0, %v2388
        %2390 = vmatmul.f32.gmra.mxu0 %v2347
        %v2391 = vpop.f32.mrf.mxu0
        %v2392 = vadd.f32 0.0, %v2391
        %2393 = vmatmul.f32.gmra.mxu0 %v2348
        %v2394 = vpop.f32.mrf.mxu0
        %v2395 = vadd.f32 0.0, %v2394
        %2396 = vmatmul.f32.gmra.mxu0 %v2349
        %v2397 = vpop.f32.mrf.mxu0
        %v2398 = vadd.f32 0.0, %v2397
        %2399 = vmatmul.f32.gmra.mxu0 %v2350
        %v2400 = vpop.f32.mrf.mxu0
        %v2401 = vadd.f32 0.0, %v2400
        %2402 = vmatmul.f32.gmra.mxu0 %v2351
        %v2403 = vpop.f32.mrf.mxu0
        %v2404 = vadd.f32 0.0, %v2403
        %2405 = vmatmul.f32.gmra.mxu0 %v2352
        %v2406 = vpop.f32.mrf.mxu0
        %v2407 = vadd.f32 0.0, %v2406
        %2408 = vmatmul.f32.gmra.mxu0 %v2353
        %v2409 = vpop.f32.mrf.mxu0
        %v2410 = vadd.f32 0.0, %v2409
        %2411 = vdwg.mxu0
        %v2412 = vadd.f32 %v2338, %v2389
        %v2413 = vadd.f32 %v2339, %v2392
        %v2414 = vadd.f32 %v2340, %v2395
        %v2415 = vadd.f32 %v2341, %v2398
        %v2416 = vadd.f32 %v2342, %v2401
        %v2417 = vadd.f32 %v2343, %v2404
        %v2418 = vadd.f32 %v2344, %v2407
        %v2419 = vadd.f32 %v2345, %v2410
        %v2420 = vld [vmem:[#allocation3 + $0x2] sm:$0xff]
        %v2421 = vld [vmem:[#allocation3 + $0x12] sm:$0xff]
        %v2422 = vld [vmem:[#allocation3 + $0x22] sm:$0xff]
        %v2423 = vld [vmem:[#allocation3 + $0x32] sm:$0xff]
        %v2424 = vld [vmem:[#allocation3 + $0x42] sm:$0xff]
        %v2425 = vld [vmem:[#allocation3 + $0x52] sm:$0xff]
        %v2426 = vld [vmem:[#allocation3 + $0x62] sm:$0xff]
        %v2427 = vld [vmem:[#allocation3 + $0x72] sm:$0xff]
        %s2428 = scalar_lea.vmem [#allocation6], 256
        %v2429 = vld [vmem:[%s2428] sm:$0xff]
        %v2430 = vld [vmem:[%s2428 + $0x8] sm:$0xff]
        %v2431 = vld [vmem:[%s2428 + $0x10] sm:$0xff]
        %v2432 = vld [vmem:[%s2428 + $0x18] sm:$0xff]
        %v2433 = vld [vmem:[%s2428 + $0x20] sm:$0xff]
        %v2434 = vld [vmem:[%s2428 + $0x28] sm:$0xff]
        %v2435 = vld [vmem:[%s2428 + $0x30] sm:$0xff]
        %v2436 = vld [vmem:[%s2428 + $0x38] sm:$0xff]
        %v2437 = vld [vmem:[%s2428 + $0x40] sm:$0xff]
        %v2438 = vld [vmem:[%s2428 + $0x48] sm:$0xff]
        %v2439 = vld [vmem:[%s2428 + $0x50] sm:$0xff]
        %v2440 = vld [vmem:[%s2428 + $0x58] sm:$0xff]
        %v2441 = vld [vmem:[%s2428 + $0x60] sm:$0xff]
        %v2442 = vld [vmem:[%s2428 + $0x68] sm:$0xff]
        %v2443 = vld [vmem:[%s2428 + $0x70] sm:$0xff]
        %v2444 = vld [vmem:[%s2428 + $0x78] sm:$0xff]
        %2445 = vmatpush.msra.mxu0 %v2444
        %2446 = vmatpush.msra.mxu0 %v2443
        %2447 = vmatpush.msra.mxu0 %v2442
        %2448 = vmatpush.msra.mxu0 %v2441
        %2449 = vmatpush.msra.mxu0 %v2440
        %2450 = vmatpush.msra.mxu0 %v2439
        %2451 = vmatpush.msra.mxu0 %v2438
        %2452 = vmatpush.msra.mxu0 %v2437
        %2453 = vmatpush.msra.mxu0 %v2436
        %2454 = vmatpush.msra.mxu0 %v2435
        %2455 = vmatpush.msra.mxu0 %v2434
        %2456 = vmatpush.msra.mxu0 %v2433
        %2457 = vmatpush.msra.mxu0 %v2432
        %2458 = vmatpush.msra.mxu0 %v2431
        %2459 = vmatpush.msra.mxu0 %v2430
        %2460 = vmatpush.msra.mxu0 %v2429
        %2461 = vmatmul.f32.gmra.mxu0 %v2420
        %v2462 = vpop.f32.mrf.mxu0
        %v2463 = vadd.f32 0.0, %v2462
        %2464 = vmatmul.f32.gmra.mxu0 %v2421
        %v2465 = vpop.f32.mrf.mxu0
        %v2466 = vadd.f32 0.0, %v2465
        %2467 = vmatmul.f32.gmra.mxu0 %v2422
        %v2468 = vpop.f32.mrf.mxu0
        %v2469 = vadd.f32 0.0, %v2468
        %2470 = vmatmul.f32.gmra.mxu0 %v2423
        %v2471 = vpop.f32.mrf.mxu0
        %v2472 = vadd.f32 0.0, %v2471
        %2473 = vmatmul.f32.gmra.mxu0 %v2424
        %v2474 = vpop.f32.mrf.mxu0
        %v2475 = vadd.f32 0.0, %v2474
        %2476 = vmatmul.f32.gmra.mxu0 %v2425
        %v2477 = vpop.f32.mrf.mxu0
        %v2478 = vadd.f32 0.0, %v2477
        %2479 = vmatmul.f32.gmra.mxu0 %v2426
        %v2480 = vpop.f32.mrf.mxu0
        %v2481 = vadd.f32 0.0, %v2480
        %2482 = vmatmul.f32.gmra.mxu0 %v2427
        %v2483 = vpop.f32.mrf.mxu0
        %v2484 = vadd.f32 0.0, %v2483
        %2485 = vdwg.mxu0
        %v2486 = vadd.f32 %v2412, %v2463
        %v2487 = vadd.f32 %v2413, %v2466
        %v2488 = vadd.f32 %v2414, %v2469
        %v2489 = vadd.f32 %v2415, %v2472
        %v2490 = vadd.f32 %v2416, %v2475
        %v2491 = vadd.f32 %v2417, %v2478
        %v2492 = vadd.f32 %v2418, %v2481
        %v2493 = vadd.f32 %v2419, %v2484
        %v2494 = vld [vmem:[#allocation3 + $0x3] sm:$0xff]
        %v2495 = vld [vmem:[#allocation3 + $0x13] sm:$0xff]
        %v2496 = vld [vmem:[#allocation3 + $0x23] sm:$0xff]
        %v2497 = vld [vmem:[#allocation3 + $0x33] sm:$0xff]
        %v2498 = vld [vmem:[#allocation3 + $0x43] sm:$0xff]
        %v2499 = vld [vmem:[#allocation3 + $0x53] sm:$0xff]
        %v2500 = vld [vmem:[#allocation3 + $0x63] sm:$0xff]
        %v2501 = vld [vmem:[#allocation3 + $0x73] sm:$0xff]
        %s2502 = scalar_lea.vmem [#allocation6], 384
        %v2503 = vld [vmem:[%s2502] sm:$0xff]
        %v2504 = vld [vmem:[%s2502 + $0x8] sm:$0xff]
        %v2505 = vld [vmem:[%s2502 + $0x10] sm:$0xff]
        %v2506 = vld [vmem:[%s2502 + $0x18] sm:$0xff]
        %v2507 = vld [vmem:[%s2502 + $0x20] sm:$0xff]
        %v2508 = vld [vmem:[%s2502 + $0x28] sm:$0xff]
        %v2509 = vld [vmem:[%s2502 + $0x30] sm:$0xff]
        %v2510 = vld [vmem:[%s2502 + $0x38] sm:$0xff]
        %v2511 = vld [vmem:[%s2502 + $0x40] sm:$0xff]
        %v2512 = vld [vmem:[%s2502 + $0x48] sm:$0xff]
        %v2513 = vld [vmem:[%s2502 + $0x50] sm:$0xff]
        %v2514 = vld [vmem:[%s2502 + $0x58] sm:$0xff]
        %v2515 = vld [vmem:[%s2502 + $0x60] sm:$0xff]
        %v2516 = vld [vmem:[%s2502 + $0x68] sm:$0xff]
        %v2517 = vld [vmem:[%s2502 + $0x70] sm:$0xff]
        %v2518 = vld [vmem:[%s2502 + $0x78] sm:$0xff]
        %2519 = vmatpush.msra.mxu0 %v2518
        %2520 = vmatpush.msra.mxu0 %v2517
        %2521 = vmatpush.msra.mxu0 %v2516
        %2522 = vmatpush.msra.mxu0 %v2515
        %2523 = vmatpush.msra.mxu0 %v2514
        %2524 = vmatpush.msra.mxu0 %v2513
        %2525 = vmatpush.msra.mxu0 %v2512
        %2526 = vmatpush.msra.mxu0 %v2511
        %2527 = vmatpush.msra.mxu0 %v2510
        %2528 = vmatpush.msra.mxu0 %v2509
        %2529 = vmatpush.msra.mxu0 %v2508
        %2530 = vmatpush.msra.mxu0 %v2507
        %2531 = vmatpush.msra.mxu0 %v2506
        %2532 = vmatpush.msra.mxu0 %v2505
        %2533 = vmatpush.msra.mxu0 %v2504
        %2534 = vmatpush.msra.mxu0 %v2503
        %2535 = vmatmul.f32.gmra.mxu0 %v2494
        %v2536 = vpop.f32.mrf.mxu0
        %v2537 = vadd.f32 0.0, %v2536
        %2538 = vmatmul.f32.gmra.mxu0 %v2495
        %v2539 = vpop.f32.mrf.mxu0
        %v2540 = vadd.f32 0.0, %v2539
        %2541 = vmatmul.f32.gmra.mxu0 %v2496
        %v2542 = vpop.f32.mrf.mxu0
        %v2543 = vadd.f32 0.0, %v2542
        %2544 = vmatmul.f32.gmra.mxu0 %v2497
        %v2545 = vpop.f32.mrf.mxu0
        %v2546 = vadd.f32 0.0, %v2545
        %2547 = vmatmul.f32.gmra.mxu0 %v2498
        %v2548 = vpop.f32.mrf.mxu0
        %v2549 = vadd.f32 0.0, %v2548
        %2550 = vmatmul.f32.gmra.mxu0 %v2499
        %v2551 = vpop.f32.mrf.mxu0
        %v2552 = vadd.f32 0.0, %v2551
        %2553 = vmatmul.f32.gmra.mxu0 %v2500
        %v2554 = vpop.f32.mrf.mxu0
        %v2555 = vadd.f32 0.0, %v2554
        %2556 = vmatmul.f32.gmra.mxu0 %v2501
        %v2557 = vpop.f32.mrf.mxu0
        %v2558 = vadd.f32 0.0, %v2557
        %2559 = vdwg.mxu0
        %v2560 = vadd.f32 %v2486, %v2537
        %v2561 = vadd.f32 %v2487, %v2540
        %v2562 = vadd.f32 %v2488, %v2543
        %v2563 = vadd.f32 %v2489, %v2546
        %v2564 = vadd.f32 %v2490, %v2549
        %v2565 = vadd.f32 %v2491, %v2552
        %v2566 = vadd.f32 %v2492, %v2555
        %v2567 = vadd.f32 %v2493, %v2558
        %v2568 = vld [vmem:[#allocation3 + $0x4] sm:$0xff]
        %v2569 = vld [vmem:[#allocation3 + $0x14] sm:$0xff]
        %v2570 = vld [vmem:[#allocation3 + $0x24] sm:$0xff]
        %v2571 = vld [vmem:[#allocation3 + $0x34] sm:$0xff]
        %v2572 = vld [vmem:[#allocation3 + $0x44] sm:$0xff]
        %v2573 = vld [vmem:[#allocation3 + $0x54] sm:$0xff]
        %v2574 = vld [vmem:[#allocation3 + $0x64] sm:$0xff]
        %v2575 = vld [vmem:[#allocation3 + $0x74] sm:$0xff]
        %s2576 = scalar_lea.vmem [#allocation6], 512
        %v2577 = vld [vmem:[%s2576] sm:$0xff]
        %v2578 = vld [vmem:[%s2576 + $0x8] sm:$0xff]
        %v2579 = vld [vmem:[%s2576 + $0x10] sm:$0xff]
        %v2580 = vld [vmem:[%s2576 + $0x18] sm:$0xff]
        %v2581 = vld [vmem:[%s2576 + $0x20] sm:$0xff]
        %v2582 = vld [vmem:[%s2576 + $0x28] sm:$0xff]
        %v2583 = vld [vmem:[%s2576 + $0x30] sm:$0xff]
        %v2584 = vld [vmem:[%s2576 + $0x38] sm:$0xff]
        %v2585 = vld [vmem:[%s2576 + $0x40] sm:$0xff]
        %v2586 = vld [vmem:[%s2576 + $0x48] sm:$0xff]
        %v2587 = vld [vmem:[%s2576 + $0x50] sm:$0xff]
        %v2588 = vld [vmem:[%s2576 + $0x58] sm:$0xff]
        %v2589 = vld [vmem:[%s2576 + $0x60] sm:$0xff]
        %v2590 = vld [vmem:[%s2576 + $0x68] sm:$0xff]
        %v2591 = vld [vmem:[%s2576 + $0x70] sm:$0xff]
        %v2592 = vld [vmem:[%s2576 + $0x78] sm:$0xff]
        %2593 = vmatpush.msra.mxu0 %v2592
        %2594 = vmatpush.msra.mxu0 %v2591
        %2595 = vmatpush.msra.mxu0 %v2590
        %2596 = vmatpush.msra.mxu0 %v2589
        %2597 = vmatpush.msra.mxu0 %v2588
        %2598 = vmatpush.msra.mxu0 %v2587
        %2599 = vmatpush.msra.mxu0 %v2586
        %2600 = vmatpush.msra.mxu0 %v2585
        %2601 = vmatpush.msra.mxu0 %v2584
        %2602 = vmatpush.msra.mxu0 %v2583
        %2603 = vmatpush.msra.mxu0 %v2582
        %2604 = vmatpush.msra.mxu0 %v2581
        %2605 = vmatpush.msra.mxu0 %v2580
        %2606 = vmatpush.msra.mxu0 %v2579
        %2607 = vmatpush.msra.mxu0 %v2578
        %2608 = vmatpush.msra.mxu0 %v2577
        %2609 = vmatmul.f32.gmra.mxu0 %v2568
        %v2610 = vpop.f32.mrf.mxu0
        %v2611 = vadd.f32 0.0, %v2610
        %2612 = vmatmul.f32.gmra.mxu0 %v2569
        %v2613 = vpop.f32.mrf.mxu0
        %v2614 = vadd.f32 0.0, %v2613
        %2615 = vmatmul.f32.gmra.mxu0 %v2570
        %v2616 = vpop.f32.mrf.mxu0
        %v2617 = vadd.f32 0.0, %v2616
        %2618 = vmatmul.f32.gmra.mxu0 %v2571
        %v2619 = vpop.f32.mrf.mxu0
        %v2620 = vadd.f32 0.0, %v2619
        %2621 = vmatmul.f32.gmra.mxu0 %v2572
        %v2622 = vpop.f32.mrf.mxu0
        %v2623 = vadd.f32 0.0, %v2622
        %2624 = vmatmul.f32.gmra.mxu0 %v2573
        %v2625 = vpop.f32.mrf.mxu0
        %v2626 = vadd.f32 0.0, %v2625
        %2627 = vmatmul.f32.gmra.mxu0 %v2574
        %v2628 = vpop.f32.mrf.mxu0
        %v2629 = vadd.f32 0.0, %v2628
        %2630 = vmatmul.f32.gmra.mxu0 %v2575
        %v2631 = vpop.f32.mrf.mxu0
        %v2632 = vadd.f32 0.0, %v2631
        %2633 = vdwg.mxu0
        %v2634 = vadd.f32 %v2560, %v2611
        %v2635 = vadd.f32 %v2561, %v2614
        %v2636 = vadd.f32 %v2562, %v2617
        %v2637 = vadd.f32 %v2563, %v2620
        %v2638 = vadd.f32 %v2564, %v2623
        %v2639 = vadd.f32 %v2565, %v2626
        %v2640 = vadd.f32 %v2566, %v2629
        %v2641 = vadd.f32 %v2567, %v2632
        %2642 = vrot.lane.b32.xlu0 %v2634, 127
        %v2643 = vpop.permute.xlu0 %2642
        %2644 = vrot.lane.b32.xlu0 %v2635, 127
        %v2645 = vpop.permute.xlu0 %2644
        %2646 = vrot.lane.b32.xlu0 %v2636, 127
        %v2647 = vpop.permute.xlu0 %2646
        %2648 = vrot.lane.b32.xlu0 %v2637, 127
        %v2649 = vpop.permute.xlu0 %2648
        %2650 = vrot.lane.b32.xlu0 %v2638, 127
        %v2651 = vpop.permute.xlu0 %2650
        %2652 = vrot.lane.b32.xlu0 %v2639, 127
        %v2653 = vpop.permute.xlu0 %2652
        %2654 = vrot.lane.b32.xlu0 %v2640, 127
        %v2655 = vpop.permute.xlu0 %2654
        %2656 = vrot.lane.b32.xlu0 %v2641, 127
        %v2657 = vpop.permute.xlu0 %2656
        %v2658 = vmax.f32 %v2634, %v2643
        %v2659 = vmax.f32 %v2635, %v2645
        %v2660 = vmax.f32 %v2636, %v2647
        %v2661 = vmax.f32 %v2637, %v2649
        %v2662 = vmax.f32 %v2638, %v2651
        %v2663 = vmax.f32 %v2639, %v2653
        %v2664 = vmax.f32 %v2640, %v2655
        %v2665 = vmax.f32 %v2641, %v2657
        %2666 = vst [vmem:[#allocation4] sm:$0xff] %v2658
        %2667 = vst [vmem:[#allocation4 + $0x8] sm:$0xff] %v2659
        %2668 = vst [vmem:[#allocation4 + $0x10] sm:$0xff] %v2660
        %2669 = vst [vmem:[#allocation4 + $0x18] sm:$0xff] %v2661
        %2670 = vst [vmem:[#allocation4 + $0x20] sm:$0xff] %v2662
        %2671 = vst [vmem:[#allocation4 + $0x28] sm:$0xff] %v2663
        %2672 = vst [vmem:[#allocation4 + $0x30] sm:$0xff] %v2664
        %2673 = vst [vmem:[#allocation4 + $0x38] sm:$0xff] %v2665
        %v2674 = vld [vmem:[#allocation4] ss:$2 sm:$0xff]
        %s2675 = scalar_lea.vmem [#allocation4], 16
        %v2676 = vld [vmem:[%s2675] ss:$2 sm:$0xff]
        %s2677 = scalar_lea.vmem [#allocation4], 32
        %v2678 = vld [vmem:[%s2677] ss:$2 sm:$0xff]
        %s2679 = scalar_lea.vmem [#allocation4], 48
        %v2680 = vld [vmem:[%s2679] ss:$2 sm:$0xff]
        %s2681 = scalar_lea.vmem [#allocation4], 1
        %v2682 = vld [vmem:[%s2681] ss:$2 sm:$0xff]
        %s2683 = scalar_lea.vmem [#allocation4], 17
        %v2684 = vld [vmem:[%s2683] ss:$2 sm:$0xff]
        %s2685 = scalar_lea.vmem [#allocation4], 33
        %v2686 = vld [vmem:[%s2685] ss:$2 sm:$0xff]
        %s2687 = scalar_lea.vmem [#allocation4], 49
        %v2688 = vld [vmem:[%s2687] ss:$2 sm:$0xff]
        %v2689 = vmax.f32 %v2674, %v2682
        %v2690 = vmax.f32 %v2676, %v2684
        %v2691 = vmax.f32 %v2678, %v2686
        %v2692 = vmax.f32 %v2680, %v2688
        %v2693 = vmax.f32 %v2689, 0.0
        %v2694 = vmax.f32 %v2690, 0.0
        %v2695 = vmax.f32 %v2691, 0.0
        %v2696 = vmax.f32 %v2692, 0.0
        %2697 = vst [vmem:[#allocation5] sm:$0xff] %v2693
        %2698 = vst [vmem:[#allocation5 + $0x8] sm:$0xff] %v2694
        %2699 = vst [vmem:[#allocation5 + $0x10] sm:$0xff] %v2695
        %2700 = vst [vmem:[#allocation5 + $0x18] sm:$0xff] %v2696
        %v2701 = vld [vmem:[%s6] sm:$0x1]
        %v2703 = vperm.slane %v2701, 0
        %v2705 = vld [vmem:[#allocation5] ss:$4 sm:$0xff]
        %v2706 = vld [vmem:[#allocation9] sm:$0xff]
        %v2707 = vld [vmem:[#allocation9 + $0x8] sm:$0xff]
        %v2708 = vld [vmem:[#allocation9 + $0x10] sm:$0xff]
        %v2709 = vld [vmem:[#allocation9 + $0x18] sm:$0xff]
        %v2710 = vld [vmem:[#allocation9 + $0x20] sm:$0xff]
        %v2711 = vld [vmem:[#allocation9 + $0x28] sm:$0xff]
        %v2712 = vld [vmem:[#allocation9 + $0x30] sm:$0xff]
        %v2713 = vld [vmem:[#allocation9 + $0x38] sm:$0xff]
        %v2714 = vld [vmem:[#allocation9 + $0x40] sm:$0xff]
        %v2715 = vld [vmem:[#allocation9 + $0x48] sm:$0xff]
        %v2716 = vld [vmem:[#allocation9 + $0x50] sm:$0xff]
        %v2717 = vld [vmem:[#allocation9 + $0x58] sm:$0xff]
        %v2718 = vld [vmem:[#allocation9 + $0x60] sm:$0xff]
        %v2719 = vld [vmem:[#allocation9 + $0x68] sm:$0xff]
        %v2720 = vld [vmem:[#allocation9 + $0x70] sm:$0xff]
        %v2721 = vld [vmem:[#allocation9 + $0x78] sm:$0xff]
        %2722 = vmatpush.msra.mxu0 %v2721
        %2723 = vmatpush.msra.mxu0 %v2720
        %2724 = vmatpush.msra.mxu0 %v2719
        %2725 = vmatpush.msra.mxu0 %v2718
        %2726 = vmatpush.msra.mxu0 %v2717
        %2727 = vmatpush.msra.mxu0 %v2716
        %2728 = vmatpush.msra.mxu0 %v2715
        %2729 = vmatpush.msra.mxu0 %v2714
        %2730 = vmatpush.msra.mxu0 %v2713
        %2731 = vmatpush.msra.mxu0 %v2712
        %2732 = vmatpush.msra.mxu0 %v2711
        %2733 = vmatpush.msra.mxu0 %v2710
        %2734 = vmatpush.msra.mxu0 %v2709
        %2735 = vmatpush.msra.mxu0 %v2708
        %2736 = vmatpush.msra.mxu0 %v2707
        %2737 = vmatpush.msra.mxu0 %v2706
        %2738 = vmatmul.f32.gmra.mxu0 %v2705
        %v2739 = vpop.f32.mrf.mxu0
        %v2740 = vadd.f32 0.0, %v2739
        %2741 = vdwg.mxu0
        %v2742 = vadd.f32 %v2703, %v2740
        %s2743 = scalar_lea.vmem [#allocation5], 1
        %v2744 = vld [vmem:[%s2743] ss:$4 sm:$0xff]
        %s2745 = scalar_lea.vmem [#allocation9], 128
        %v2746 = vld [vmem:[%s2745] sm:$0xff]
        %v2747 = vld [vmem:[%s2745 + $0x8] sm:$0xff]
        %v2748 = vld [vmem:[%s2745 + $0x10] sm:$0xff]
        %v2749 = vld [vmem:[%s2745 + $0x18] sm:$0xff]
        %v2750 = vld [vmem:[%s2745 + $0x20] sm:$0xff]
        %v2751 = vld [vmem:[%s2745 + $0x28] sm:$0xff]
        %v2752 = vld [vmem:[%s2745 + $0x30] sm:$0xff]
        %v2753 = vld [vmem:[%s2745 + $0x38] sm:$0xff]
        %v2754 = vld [vmem:[%s2745 + $0x40] sm:$0xff]
        %v2755 = vld [vmem:[%s2745 + $0x48] sm:$0xff]
        %v2756 = vld [vmem:[%s2745 + $0x50] sm:$0xff]
        %v2757 = vld [vmem:[%s2745 + $0x58] sm:$0xff]
        %v2758 = vld [vmem:[%s2745 + $0x60] sm:$0xff]
        %v2759 = vld [vmem:[%s2745 + $0x68] sm:$0xff]
        %v2760 = vld [vmem:[%s2745 + $0x70] sm:$0xff]
        %v2761 = vld [vmem:[%s2745 + $0x78] sm:$0xff]
        %2762 = vmatpush.msra.mxu0 %v2761
        %2763 = vmatpush.msra.mxu0 %v2760
        %2764 = vmatpush.msra.mxu0 %v2759
        %2765 = vmatpush.msra.mxu0 %v2758
        %2766 = vmatpush.msra.mxu0 %v2757
        %2767 = vmatpush.msra.mxu0 %v2756
        %2768 = vmatpush.msra.mxu0 %v2755
        %2769 = vmatpush.msra.mxu0 %v2754
        %2770 = vmatpush.msra.mxu0 %v2753
        %2771 = vmatpush.msra.mxu0 %v2752
        %2772 = vmatpush.msra.mxu0 %v2751
        %2773 = vmatpush.msra.mxu0 %v2750
        %2774 = vmatpush.msra.mxu0 %v2749
        %2775 = vmatpush.msra.mxu0 %v2748
        %2776 = vmatpush.msra.mxu0 %v2747
        %2777 = vmatpush.msra.mxu0 %v2746
        %2778 = vmatmul.f32.gmra.mxu0 %v2744
        %v2779 = vpop.f32.mrf.mxu0
        %v2780 = vadd.f32 0.0, %v2779
        %2781 = vdwg.mxu0
        %v2782 = vadd.f32 %v2742, %v2780
        %s2783 = scalar_lea.vmem [#allocation5], 2
        %v2784 = vld [vmem:[%s2783] ss:$4 sm:$0xff]
        %s2785 = scalar_lea.vmem [#allocation9], 256
        %v2786 = vld [vmem:[%s2785] sm:$0xff]
        %v2787 = vld [vmem:[%s2785 + $0x8] sm:$0xff]
        %v2788 = vld [vmem:[%s2785 + $0x10] sm:$0xff]
        %v2789 = vld [vmem:[%s2785 + $0x18] sm:$0xff]
        %v2790 = vld [vmem:[%s2785 + $0x20] sm:$0xff]
        %v2791 = vld [vmem:[%s2785 + $0x28] sm:$0xff]
        %v2792 = vld [vmem:[%s2785 + $0x30] sm:$0xff]
        %v2793 = vld [vmem:[%s2785 + $0x38] sm:$0xff]
        %v2794 = vld [vmem:[%s2785 + $0x40] sm:$0xff]
        %v2795 = vld [vmem:[%s2785 + $0x48] sm:$0xff]
        %v2796 = vld [vmem:[%s2785 + $0x50] sm:$0xff]
        %v2797 = vld [vmem:[%s2785 + $0x58] sm:$0xff]
        %v2798 = vld [vmem:[%s2785 + $0x60] sm:$0xff]
        %v2799 = vld [vmem:[%s2785 + $0x68] sm:$0xff]
        %v2800 = vld [vmem:[%s2785 + $0x70] sm:$0xff]
        %v2801 = vld [vmem:[%s2785 + $0x78] sm:$0xff]
        %2802 = vmatpush.msra.mxu0 %v2801
        %2803 = vmatpush.msra.mxu0 %v2800
        %2804 = vmatpush.msra.mxu0 %v2799
        %2805 = vmatpush.msra.mxu0 %v2798
        %2806 = vmatpush.msra.mxu0 %v2797
        %2807 = vmatpush.msra.mxu0 %v2796
        %2808 = vmatpush.msra.mxu0 %v2795
        %2809 = vmatpush.msra.mxu0 %v2794
        %2810 = vmatpush.msra.mxu0 %v2793
        %2811 = vmatpush.msra.mxu0 %v2792
        %2812 = vmatpush.msra.mxu0 %v2791
        %2813 = vmatpush.msra.mxu0 %v2790
        %2814 = vmatpush.msra.mxu0 %v2789
        %2815 = vmatpush.msra.mxu0 %v2788
        %2816 = vmatpush.msra.mxu0 %v2787
        %2817 = vmatpush.msra.mxu0 %v2786
        %2818 = vmatmul.f32.gmra.mxu0 %v2784
        %v2819 = vpop.f32.mrf.mxu0
        %v2820 = vadd.f32 0.0, %v2819
        %2821 = vdwg.mxu0
        %v2822 = vadd.f32 %v2782, %v2820
        %s2823 = scalar_lea.vmem [#allocation5], 3
        %v2824 = vld [vmem:[%s2823] ss:$4 sm:$0xff]
        %s2825 = scalar_lea.vmem [#allocation9], 384
        %v2826 = vld [vmem:[%s2825] sm:$0xff]
        %v2827 = vld [vmem:[%s2825 + $0x8] sm:$0xff]
        %v2828 = vld [vmem:[%s2825 + $0x10] sm:$0xff]
        %v2829 = vld [vmem:[%s2825 + $0x18] sm:$0xff]
        %v2830 = vld [vmem:[%s2825 + $0x20] sm:$0xff]
        %v2831 = vld [vmem:[%s2825 + $0x28] sm:$0xff]
        %v2832 = vld [vmem:[%s2825 + $0x30] sm:$0xff]
        %v2833 = vld [vmem:[%s2825 + $0x38] sm:$0xff]
        %v2834 = vld [vmem:[%s2825 + $0x40] sm:$0xff]
        %v2835 = vld [vmem:[%s2825 + $0x48] sm:$0xff]
        %v2836 = vld [vmem:[%s2825 + $0x50] sm:$0xff]
        %v2837 = vld [vmem:[%s2825 + $0x58] sm:$0xff]
        %v2838 = vld [vmem:[%s2825 + $0x60] sm:$0xff]
        %v2839 = vld [vmem:[%s2825 + $0x68] sm:$0xff]
        %v2840 = vld [vmem:[%s2825 + $0x70] sm:$0xff]
        %v2841 = vld [vmem:[%s2825 + $0x78] sm:$0xff]
        %2842 = vmatpush.msra.mxu0 %v2841
        %2843 = vmatpush.msra.mxu0 %v2840
        %2844 = vmatpush.msra.mxu0 %v2839
        %2845 = vmatpush.msra.mxu0 %v2838
        %2846 = vmatpush.msra.mxu0 %v2837
        %2847 = vmatpush.msra.mxu0 %v2836
        %2848 = vmatpush.msra.mxu0 %v2835
        %2849 = vmatpush.msra.mxu0 %v2834
        %2850 = vmatpush.msra.mxu0 %v2833
        %2851 = vmatpush.msra.mxu0 %v2832
        %2852 = vmatpush.msra.mxu0 %v2831
        %2853 = vmatpush.msra.mxu0 %v2830
        %2854 = vmatpush.msra.mxu0 %v2829
        %2855 = vmatpush.msra.mxu0 %v2828
        %2856 = vmatpush.msra.mxu0 %v2827
        %2857 = vmatpush.msra.mxu0 %v2826
        %2858 = vmatmul.f32.gmra.mxu0 %v2824
        %v2859 = vpop.f32.mrf.mxu0
        %v2860 = vadd.f32 0.0, %v2859
        %2861 = vdwg.mxu0
        %v2862 = vadd.f32 %v2822, %v2860
        %2863 = vst [vmem:[%s308] sm:$0xff] %v2862
        %s2864 = sand.u32 %s183, 1
        %s2865 = scalar_lea.sflag [#allocation8], %s2864
        %s2866 = sand.u32 %s183, 1
        %s2867 = smul.addr %s2866, 8
        %s2868 = scalar_lea.vmem [#allocation11], %s2867
        // Predicated region
        $region57: #{tpu_custom_call.1} parent=47 // pred_check
          %p2869 = pneg %p193
        $region58: #{tpu_custom_call.1} parent=47 // pred_check_branch
          %2871 = sbr.rel (%p2869) target = $region60
        $region59: #{tpu_custom_call.1} parent=47 // pred_region
          %2873 = vsyncadd %s2865, 0
          %s2874 = smul.addr %s23, 8
          %s2875 = scalar_lea.hbm %s7, %s2874
          %s2877 = sshll.u32 %s2868, 4
          %s2878 = int_to_ptr.vmem [resolvable:$true] %s2877
          %s2879 = sshll.u32 %s2875, 4
          %s2880 = int_to_ptr.hbm [resolvable:$true] %s2879
          %2882 = dma.vmem_to_hbm [thread:$0]  %s2878, 128, %s2880, %s2865
        $region60: #{tpu_custom_call.1} parent=47 // pred_fallthru
          _
      $region48: #{tpu_custom_call.1} parent=5 // pred_fallthru
        _
      %p2883 = scmp.le.s32.totalorder 2, %s18
      // Predicated region
      $region61: #{tpu_custom_call.1} parent=5 // pred_check
        %p2884 = pneg %p2883
      $region62: #{tpu_custom_call.1} parent=5 // pred_check_branch
        %2886 = sbr.rel (%p2884) target = $region64
      $region63: #{tpu_custom_call.1} parent=5 // pred_region
        %s2887 = ssub.s32 %s18, 2
        // Predicated region
        $region65: #{tpu_custom_call.1} parent=63 // pred_check
          %p2888 = pneg %p199
        $region66: #{tpu_custom_call.1} parent=63 // pred_check_branch
          %2890 = sbr.rel (%p2888) target = $region68
        $region67: #{tpu_custom_call.1} parent=63 // pred_region
          %s2891 = sand.u32 %s184, 1
          %s2892 = scalar_lea.sflag [#allocation8], %s2891
          %s2893 = sand.u32 %s184, 1
          %s2894 = smul.addr %s2893, 8
          %s2895 = scalar_lea.vmem [#allocation11], %s2894
          %2897 = dma.done %s2892, 128
        $region68: #{tpu_custom_call.1} parent=63 // pred_fallthru
          _
      $region64: #{tpu_custom_call.1} parent=5 // pred_fallthru
        _
    $region6: #{tpu_custom_call.1} parent=1 // loop_footer
      %s22 = sadd.s32 1, %s18
    $region7: #{tpu_custom_call.1} parent=1 // loop_footer_branch
      %17 = sbr.rel target = $region3
    $region8: #{tpu_custom_call.1} parent=1 // loop_exit
      _
    %2898 = vsyncpa [#allocation7], 1
    %s2899 = scalar_lea.sflag [#allocation7], 1
    %2900 = vsyncpa %s2899, 1
    %2901 = vsyncpa [#allocation10], 1
    %2902 = vsyncpa [#allocation8], 1
    %s2903 = scalar_lea.sflag [#allocation8], 1
    %2904 = vsyncpa %s2903, 1

</llo_original>
